<compile_context>
chip_gen: v7x
topology: tpu7x:2x2x1
jax: 0.10.0
libtpu: 0.0.40
codegen_flags: <defaults>
</compile_context>

<pallas_src>
import math

import jax
import jax.numpy as jnp
from jax.experimental import pallas as pl
from jax.experimental.pallas import tpu as pltpu


def _round_up(x, m):
    return ((x + m - 1) // m) * m


# ---------------------------------------------------------------------------
# Pallas kernel: fused twin-Q MLP forward (one batch tile per grid step)
# ---------------------------------------------------------------------------
def _qnetwork_kernel(
    s_ref, a_ref,                 # (TILE_B, ni), (TILE_B, na)
    w1s_ref, w1a_ref, b1_ref,     # (ni, 2Hp), (na, 2Hp), (1, 2Hp)
    w2_ref, b2_ref,               # (2Hp, 2Hp) block-diag, (1, 2Hp)
    w3_ref, b3_ref,               # (2Hp, 2), (1, 2)
    out_ref,                      # (TILE_B, 2)
):
    # Fused first layer for both heads (no xu concat: split-K over state/action).
    h = jnp.dot(s_ref[...], w1s_ref[...], preferred_element_type=jnp.float32)
    h = h + jnp.dot(a_ref[...], w1a_ref[...], preferred_element_type=jnp.float32)
    h = jnp.maximum(h + b1_ref[...], 0.0)

    # Fused second layer: block-diagonal [w2 0; 0 w5] keeps heads independent.
    g = jnp.dot(h, w2_ref[...], preferred_element_type=jnp.float32) + b2_ref[...]
    g = jnp.maximum(g, 0.0)

    # Fused output layer -> lane-dense (TILE_B, 2): column 0 = q1, column 1 = q2.
    q = jnp.dot(g, w3_ref[...], preferred_element_type=jnp.float32) + b3_ref[...]
    out_ref[...] = q.astype(out_ref.dtype)


# ---------------------------------------------------------------------------
# Wrapper
# ---------------------------------------------------------------------------
def qnetwork_forward(state, action, fused, *, tile_b=256):
    """Twin-Q forward. state: [B, num_inputs], action: [B, num_actions].

    `fused` comes from fuse_qnetwork_params(). Returns (q1, q2), each [B, 1].
    """
    state = state.astype(jnp.float32)
    action = action.astype(jnp.float32)
    batch, ni = state.shape
    _, na = action.shape
    two_hp = fused["w1s"].shape[1]

    # Batch tile: multiple of 8 (f32 sublane) unless it spans the whole batch.
    if batch <= tile_b:
        tile_b = batch
    else:
        tile_b = max(8, (tile_b // 8) * 8)
    grid = (pl.cdiv(batch, tile_b),)

    batched = lambda i: (i, 0)   # walks the batch axis
    resident = lambda i: (0, 0)  # same block every step -> stays in VMEM

    in_specs = [
        pl.BlockSpec((tile_b, ni), batched),
        pl.BlockSpec((tile_b, na), batched),
        pl.BlockSpec(fused["w1s"].shape, resident),
        pl.BlockSpec(fused["w1a"].shape, resident),
        pl.BlockSpec(fused["b1"].shape, resident),
        pl.BlockSpec(fused["w2"].shape, resident),
        pl.BlockSpec(fused["b2"].shape, resident),
        pl.BlockSpec(fused["w3"].shape, resident),
        pl.BlockSpec(fused["b3"].shape, resident),
    ]
    out_specs = pl.BlockSpec((tile_b, 2), batched)

    flops = 2 * batch * ((ni + na) * two_hp + two_hp * two_hp + two_hp * 2)
    bytes_accessed = 4 * (
        batch * (ni + na + 2) + sum(int(v.size) for v in fused.values())
    )
    cost = pl.CostEstimate(
        flops=flops, transcendentals=0, bytes_accessed=bytes_accessed
    )

    out = pl.pallas_call(
        _qnetwork_kernel,
        out_shape=jax.ShapeDtypeStruct((batch, 2), jnp.float32),
        grid=grid,
        in_specs=in_specs,
        out_specs=out_specs,
        compiler_params=pltpu.CompilerParams(
            dimension_semantics=("parallel",)
        ),
        cost_estimate=cost,
    )(
        state, action,
        fused["w1s"], fused["w1a"], fused["b1"],
        fused["w2"], fused["b2"],
        fused["w3"], fused["b3"],
    )

    return out[:, 0:1], out[:, 1:2]


# ---------------------------------------------------------------------------
# Parameter init (xavier_uniform_ weights, zero biases) + head fusion/padding
# ---------------------------------------------------------------------------
def _xavier_uniform(key, fan_in, fan_out):
    # torch xavier_uniform_ with gain=1: U(-a, a), a = sqrt(6 / (fan_in + fan_out))
    a = math.sqrt(6.0 / (fan_in + fan_out))
    # stored as [in, out] (transposed vs torch's [out, in]); symmetric dist.
    return jax.random.uniform(
        key, (fan_in, fan_out), dtype=jnp.float32, minval=-a, maxval=a
    )


def init_qnetwork_params(key, num_inputs, num_actions, hidden_dim):
    in_dim = num_inputs + num_actions
    keys = jax.random.split(key, 6)
    return {
        "w1": _xavier_uniform(keys[0], in_dim, hidden_dim),
        "b1": jnp.zeros((1, hidden_dim), jnp.float32),
        "w2": _xavier_uniform(keys[1], hidden_dim, hidden_dim),
        "b2": jnp.zeros((1, hidden_dim), jnp.float32),
        "w3": _xavier_uniform(keys[2], hidden_dim, 1),
        "b3": jnp.zeros((1, 1), jnp.float32),
        "w4": _xavier_uniform(keys[3], in_dim, hidden_dim),
        "b4": jnp.zeros((1, hidden_dim), jnp.float32),
        "w5": _xavier_uniform(keys[4], hidden_dim, hidden_dim),
        "b5": jnp.zeros((1, hidden_dim), jnp.float32),
        "w6": _xavier_uniform(keys[5], hidden_dim, 1),
        "b6": jnp.zeros((1, 1), jnp.float32),
    }


def fuse_qnetwork_params(params, num_inputs, num_actions, hidden_dim):
    """Fuse the two Q heads lane-wise and zero-pad hidden_dim to 128-multiple.

    Zero padding of weights + biases keeps the forward math exact
    (relu(0 + 0) = 0, and the padded rows of the next layer are zero).
    """
    H = hidden_dim
    Hp = _round_up(hidden_dim, 128)
    ni = num_inputs

    w1s = jnp.zeros((num_inputs, 2 * Hp), jnp.float32)
    w1s = w1s.at[:, :H].set(params["w1"][:ni]).at[:, Hp:Hp + H].set(params["w4"][:ni])
    w1a = jnp.zeros((num_actions, 2 * Hp), jnp.float32)
    w1a = w1a.at[:, :H].set(params["w1"][ni:]).at[:, Hp:Hp + H].set(params["w4"][ni:])
    b1 = jnp.zeros((1, 2 * Hp), jnp.float32)
    b1 = b1.at[:, :H].set(params["b1"]).at[:, Hp:Hp + H].set(params["b4"])

    w2 = jnp.zeros((2 * Hp, 2 * Hp), jnp.float32)
    w2 = w2.at[:H, :H].set(params["w2"]).at[Hp:Hp + H, Hp:Hp + H].set(params["w5"])
    b2 = jnp.zeros((1, 2 * Hp), jnp.float32)
    b2 = b2.at[:, :H].set(params["b2"]).at[:, Hp:Hp + H].set(params["b5"])

    w3 = jnp.zeros((2 * Hp, 2), jnp.float32)
    w3 = w3.at[:H, 0:1].set(params["w3"]).at[Hp:Hp + H, 1:2].set(params["w6"])
    b3 = jnp.concatenate([params["b3"], params["b6"]], axis=1)  # (1, 2)

    return {"w1s": w1s, "w1a": w1a, "b1": b1, "w2": w2, "b2": b2,
            "w3": w3, "b3": b3}


# ---------------------------------------------------------------------------
# Pure-JAX reference (unfused, matches the PyTorch forward)
# ---------------------------------------------------------------------------
def _reference_forward(state, action, p):
    xu = jnp.concatenate([state, action], axis=1)
    h1 = jax.nn.relu(xu @ p["w1"] + p["b1"])
    h1 = jax.nn.relu(h1 @ p["w2"] + p["b2"])
    q1 = h1 @ p["w3"] + p["b3"]
    h2 = jax.nn.relu(xu @ p["w4"] + p["b4"])
    h2 = jax.nn.relu(h2 @ p["w5"] + p["b5"])
    q2 = h2 @ p["w6"] + p["b6"]
    return q1, q2


if __name__ == "__main__":
    num_inputs, num_actions, hidden_dim = 16, 8, 32
    batch = 256  # tile_b=128 below -> 2 grid steps, exercises the pipeline

    key = jax.random.PRNGKey(0)
    k_params, k_state, k_action = jax.random.split(key, 3)

    params = init_qnetwork_params(k_params, num_inputs, num_actions, hidden_dim)
    fused = fuse_qnetwork_params(params, num_inputs, num_actions, hidden_dim)

    state = jax.random.normal(k_state, (batch, num_inputs), dtype=jnp.float32)
    action = jax.random.normal(k_action, (batch, num_actions), dtype=jnp.float32)

    q1, q2 = qnetwork_forward(state, action, fused, tile_b=128)
    q1 = jax.block_until_ready(q1)
    q2 = jax.block_until_ready(q2)

    # sanity check vs pure-JAX (unfused) reference
    q1_ref, q2_ref = _reference_forward(state, action, params)
    assert q1.shape == (batch, 1) and q2.shape == (batch, 1)
    assert jnp.allclose(q1, q1_ref, atol=1e-4, rtol=1e-4)
    assert jnp.allclose(q2, q2_ref, atol=1e-4, rtol=1e-4)

    print("KERNEL_OK")
</pallas_src>

<mosaic_0001>
module attributes {stable_mosaic.version = 11 : i64} {
  func.func @_qnetwork_kernel(%arg0: i32, %arg1: memref<128x16xf32, #tpu.memory_space<vmem>>, %arg2: memref<128x8xf32, #tpu.memory_space<vmem>>, %arg3: memref<16x256xf32, #tpu.memory_space<vmem>>, %arg4: memref<8x256xf32, #tpu.memory_space<vmem>>, %arg5: memref<1x256xf32, #tpu.memory_space<vmem>>, %arg6: memref<256x256xf32, #tpu.memory_space<vmem>>, %arg7: memref<1x256xf32, #tpu.memory_space<vmem>>, %arg8: memref<256x2xf32, #tpu.memory_space<vmem>>, %arg9: memref<1x2xf32, #tpu.memory_space<vmem>>, %arg10: memref<128x2xf32, #tpu.memory_space<vmem>>) attributes {dimension_semantics = [#tpu.dimension_semantics<parallel>], iteration_bounds = array<i64: 2>, scalar_prefetch = 0 : i64, scratch_operands = 0 : i64, tpu.core_type = #tpu.core_type<tc>, window_params = [{transform_indices = @transform_0, window_bounds = array<i64: 128, 16>}, {transform_indices = @transform_1, window_bounds = array<i64: 128, 8>}, {pipeline_mode = #tpu.pipeline_mode<synchronous>, transform_indices = @transform_2, window_bounds = array<i64: 16, 256>}, {pipeline_mode = #tpu.pipeline_mode<synchronous>, transform_indices = @transform_3, window_bounds = array<i64: 8, 256>}, {pipeline_mode = #tpu.pipeline_mode<synchronous>, transform_indices = @transform_4, window_bounds = array<i64: 1, 256>}, {pipeline_mode = #tpu.pipeline_mode<synchronous>, transform_indices = @transform_5, window_bounds = array<i64: 256, 256>}, {pipeline_mode = #tpu.pipeline_mode<synchronous>, transform_indices = @transform_6, window_bounds = array<i64: 1, 256>}, {pipeline_mode = #tpu.pipeline_mode<synchronous>, transform_indices = @transform_7, window_bounds = array<i64: 256, 2>}, {pipeline_mode = #tpu.pipeline_mode<synchronous>, transform_indices = @transform_8, window_bounds = array<i64: 1, 2>}, {transform_indices = @transform_9, window_bounds = array<i64: 128, 2>}]} {
    %c0 = arith.constant 0 : index
    %c0_0 = arith.constant 0 : index
    %0 = vector.load %arg1[%c0, %c0_0] : memref<128x16xf32, #tpu.memory_space<vmem>>, vector<128x16xf32>
    %c0_1 = arith.constant 0 : index
    %c0_2 = arith.constant 0 : index
    %1 = vector.load %arg3[%c0_1, %c0_2] : memref<16x256xf32, #tpu.memory_space<vmem>>, vector<16x256xf32>
    %cst = arith.constant dense<0.000000e+00> : vector<128x256xf32>
    %2 = tpu.matmul %0, %1, %cst {dimension_numbers = #tpu.dot_dimension_numbers<[1], [0], [0], [1], [0, 0, 1, 1], [], []>} : vector<128x16xf32>, vector<16x256xf32>, vector<128x256xf32> -> vector<128x256xf32>
    %c0_3 = arith.constant 0 : index
    %c0_4 = arith.constant 0 : index
    %3 = vector.load %arg2[%c0_3, %c0_4] : memref<128x8xf32, #tpu.memory_space<vmem>>, vector<128x8xf32>
    %c0_5 = arith.constant 0 : index
    %c0_6 = arith.constant 0 : index
    %4 = vector.load %arg4[%c0_5, %c0_6] : memref<8x256xf32, #tpu.memory_space<vmem>>, vector<8x256xf32>
    %cst_7 = arith.constant dense<0.000000e+00> : vector<128x256xf32>
    %5 = tpu.matmul %3, %4, %cst_7 {dimension_numbers = #tpu.dot_dimension_numbers<[1], [0], [0], [1], [0, 0, 1, 1], [], []>} : vector<128x8xf32>, vector<8x256xf32>, vector<128x256xf32> -> vector<128x256xf32>
    %6 = arith.addf %2, %5 : vector<128x256xf32>
    %c0_8 = arith.constant 0 : index
    %c0_9 = arith.constant 0 : index
    %7 = vector.load %arg5[%c0_8, %c0_9] : memref<1x256xf32, #tpu.memory_space<vmem>>, vector<1x256xf32>
    %8 = vector.broadcast %7 : vector<1x256xf32> to vector<128x256xf32>
    %9 = arith.addf %6, %8 : vector<128x256xf32>
    %cst_10 = arith.constant 0.000000e+00 : f32
    %10 = vector.broadcast %cst_10 : f32 to vector<128x256xf32>
    %11 = arith.maximumf %9, %10 : vector<128x256xf32>
    %c0_11 = arith.constant 0 : index
    %c0_12 = arith.constant 0 : index
    %12 = vector.load %arg6[%c0_11, %c0_12] : memref<256x256xf32, #tpu.memory_space<vmem>>, vector<256x256xf32>
    %cst_13 = arith.constant dense<0.000000e+00> : vector<128x256xf32>
    %13 = tpu.matmul %11, %12, %cst_13 {dimension_numbers = #tpu.dot_dimension_numbers<[1], [0], [0], [1], [0, 0, 1, 1], [], []>} : vector<128x256xf32>, vector<256x256xf32>, vector<128x256xf32> -> vector<128x256xf32>
    %c0_14 = arith.constant 0 : index
    %c0_15 = arith.constant 0 : index
    %14 = vector.load %arg7[%c0_14, %c0_15] : memref<1x256xf32, #tpu.memory_space<vmem>>, vector<1x256xf32>
    %15 = vector.broadcast %14 : vector<1x256xf32> to vector<128x256xf32>
    %16 = arith.addf %13, %15 : vector<128x256xf32>
    %cst_16 = arith.constant 0.000000e+00 : f32
    %17 = vector.broadcast %cst_16 : f32 to vector<128x256xf32>
    %18 = arith.maximumf %16, %17 : vector<128x256xf32>
    %c0_17 = arith.constant 0 : index
    %c0_18 = arith.constant 0 : index
    %19 = vector.load %arg8[%c0_17, %c0_18] : memref<256x2xf32, #tpu.memory_space<vmem>>, vector<256x2xf32>
    %cst_19 = arith.constant dense<0.000000e+00> : vector<128x2xf32>
    %20 = tpu.matmul %18, %19, %cst_19 {dimension_numbers = #tpu.dot_dimension_numbers<[1], [0], [0], [1], [0, 0, 1, 1], [], []>} : vector<128x256xf32>, vector<256x2xf32>, vector<128x2xf32> -> vector<128x2xf32>
    %c0_20 = arith.constant 0 : index
    %c0_21 = arith.constant 0 : index
    %21 = vector.load %arg9[%c0_20, %c0_21] : memref<1x2xf32, #tpu.memory_space<vmem>>, vector<1x2xf32>
    %22 = vector.broadcast %21 : vector<1x2xf32> to vector<128x2xf32>
    %23 = arith.addf %20, %22 : vector<128x2xf32>
    %c0_22 = arith.constant 0 : index
    %c0_23 = arith.constant 0 : index
    %24 = vector.load %arg10[%c0_22, %c0_23] : memref<128x2xf32, #tpu.memory_space<vmem>>, vector<128x2xf32>
    tpu.vector_store %arg10[%c0_22, %c0_23], %23 {strides = array<i32>} : memref<128x2xf32, #tpu.memory_space<vmem>>, vector<128x2xf32>,
    return
  }
  func.func @transform_0(%arg0: i32) -> (i32, i32) {
    %c0_i32 = arith.constant 0 : i32
    %c0_i32_0 = arith.constant 0 : i32
    return %arg0, %c0_i32 : i32, i32
  }
  func.func @transform_1(%arg0: i32) -> (i32, i32) {
    %c0_i32 = arith.constant 0 : i32
    %c0_i32_0 = arith.constant 0 : i32
    return %arg0, %c0_i32 : i32, i32
  }
  func.func @transform_2(%arg0: i32) -> (i32, i32) {
    %c0_i32 = arith.constant 0 : i32
    %c0_i32_0 = arith.constant 0 : i32
    %c0_i32_1 = arith.constant 0 : i32
    return %c0_i32, %c0_i32_0 : i32, i32
  }
  func.func @transform_3(%arg0: i32) -> (i32, i32) {
    %c0_i32 = arith.constant 0 : i32
    %c0_i32_0 = arith.constant 0 : i32
    %c0_i32_1 = arith.constant 0 : i32
    return %c0_i32, %c0_i32_0 : i32, i32
  }
  func.func @transform_4(%arg0: i32) -> (i32, i32) {
    %c0_i32 = arith.constant 0 : i32
    %c0_i32_0 = arith.constant 0 : i32
    %c0_i32_1 = arith.constant 0 : i32
    return %c0_i32, %c0_i32_0 : i32, i32
  }
  func.func @transform_5(%arg0: i32) -> (i32, i32) {
    %c0_i32 = arith.constant 0 : i32
    %c0_i32_0 = arith.constant 0 : i32
    %c0_i32_1 = arith.constant 0 : i32
    return %c0_i32, %c0_i32_0 : i32, i32
  }
  func.func @transform_6(%arg0: i32) -> (i32, i32) {
    %c0_i32 = arith.constant 0 : i32
    %c0_i32_0 = arith.constant 0 : i32
    %c0_i32_1 = arith.constant 0 : i32
    return %c0_i32, %c0_i32_0 : i32, i32
  }
  func.func @transform_7(%arg0: i32) -> (i32, i32) {
    %c0_i32 = arith.constant 0 : i32
    %c0_i32_0 = arith.constant 0 : i32
    %c0_i32_1 = arith.constant 0 : i32
    return %c0_i32, %c0_i32_0 : i32, i32
  }
  func.func @transform_8(%arg0: i32) -> (i32, i32) {
    %c0_i32 = arith.constant 0 : i32
    %c0_i32_0 = arith.constant 0 : i32
    %c0_i32_1 = arith.constant 0 : i32
    return %c0_i32, %c0_i32_0 : i32, i32
  }
  func.func @transform_9(%arg0: i32) -> (i32, i32) {
    %c0_i32 = arith.constant 0 : i32
    %c0_i32_0 = arith.constant 0 : i32
    return %arg0, %c0_i32 : i32, i32
  }
}

</mosaic_0001>

<llo_original>
// kernel: tpu_custom_call.1
$region0: #{tpu_custom_call.1}
  #allocation0 [shape = 'u32[]', space=smem, size = 0x4, offset = 0x4, fixed_abs, tag = 'smem constant byte address 0x4 - core index']
  #allocation1 [shape = 'u32[144,128]{1,0:T(1,128)}', space=vmem, size = 0x12000, scoped, tag = 'internal scratch']
  %s0 = inlined_call_operand.vmem [shape: f32[256,16], index: 0, kind: input, shape index: {}]
  %s1 = inlined_call_operand.vmem [shape: f32[256,8], index: 1, kind: input, shape index: {}]
  %s2 = inlined_call_operand.vmem [shape: f32[16,256], index: 2, kind: input, shape index: {}]
  %s3 = inlined_call_operand.vmem [shape: f32[8,256], index: 3, kind: input, shape index: {}]
  %s4 = inlined_call_operand.vmem [shape: f32[1,256], index: 4, kind: input, shape index: {}]
  %s5 = inlined_call_operand.vmem [shape: f32[256,256], index: 5, kind: input, shape index: {}]
  %s6 = inlined_call_operand.vmem [shape: f32[1,256], index: 6, kind: input, shape index: {}]
  %s7 = inlined_call_operand.vmem [shape: f32[256,2], index: 7, kind: input, shape index: {}]
  %s8 = inlined_call_operand.vmem [shape: f32[1,2], index: 8, kind: input, shape index: {}]
  %s9 = inlined_call_operand.vmem [shape: f32[256,2], index: 9, kind: output, shape index: {}]
  %s10 = sld [smem:[#allocation0]]
  $region69: #{tpu_custom_call.1} parent=0
    _
  %s12 = ssub.s32 1, %s10
  %s13 = scalar_select 0, %s12, %s10
  loop: start=0, step=1, limit=4
  $region2: #{tpu_custom_call.1} parent=0 // loop_pre_header
    _
  $region3: #{tpu_custom_call.1} parent=0 // loop_header
    %s15 = sphi 0, %s19
    %p16 = scmp.ge.s32.totalorder %s15, 4
    %s25 = sphi 0, %s27
    %s28 = sphi 0, %s25
    %s29 = sphi 0, %s28
    %s45 = sphi 0, %s29
    %s51 = sphi 0, %s53
    %s54 = sphi 0, %s51
    %s55 = sphi 0, %s54
    %s71 = sphi 0, %s55
    %s75 = sphi 0, %s75
    %s77 = sphi 0, %s75
    %s78 = sphi 0, %s77
    %s92 = sphi 0, %s78
    %s96 = sphi 0, %s96
    %s98 = sphi 0, %s96
    %s99 = sphi 0, %s98
    %s113 = sphi 0, %s99
    %s117 = sphi 0, %s117
    %s119 = sphi 0, %s117
    %s120 = sphi 0, %s119
    %s134 = sphi 0, %s120
    %s138 = sphi 0, %s138
    %s140 = sphi 0, %s138
    %s141 = sphi 0, %s140
    %s155 = sphi 0, %s141
    %s159 = sphi 0, %s159
    %s161 = sphi 0, %s159
    %s162 = sphi 0, %s161
    %s176 = sphi 0, %s162
    %s180 = sphi 0, %s180
    %s182 = sphi 0, %s180
    %s183 = sphi 0, %s182
    %s197 = sphi 0, %s183
    %s201 = sphi 0, %s201
    %s203 = sphi 0, %s201
    %s204 = sphi 0, %s203
    %s218 = sphi 0, %s204
    %s224 = sphi 0, %s226
    %s227 = sphi 0, %s224
    %s228 = sphi 0, %s227
    %s244 = sphi 0, %s228
  $region4: #{tpu_custom_call.1} parent=0 // loop_header_branch
    %18 = sbr.rel (%p16) target = $region8
  $region5: #{tpu_custom_call.1} parent=0 // loop_body
    %s20 = ssub.s32 %s15, 1
    %s21 = ssub.s32 %s15, 2
    %s22 = sadd.s32 %s15, 1
    %s23 = ssub.s32 %s15, %s22
    %p24 = scmp.eq.s32.totalorder %s23, 0
    %s26 = sadd.s32 %s25, 1
    %s27 = scalar_select %p24, %s25, %s26
    %p30 = pneg %p24
    %p31 = scmp.eq.s32.totalorder %s15, 1
    %p32 = por %p30, %p31
    %p33 = scmp.ne.s32.totalorder %s25, %s28
    %p34 = scmp.eq.s32.totalorder %s15, 0
    %p35 = por %p33, %p34
    %p36 = scmp.ne.s32.totalorder %s25, %s28
    %p37 = scmp.eq.s32.totalorder %s20, 1
    %p38 = por %p36, %p37
    %p39 = scmp.ne.s32.totalorder %s28, %s29
    %p40 = scmp.eq.s32.totalorder %s20, 0
    %p41 = por %p39, %p40
    %p42 = scmp.ne.s32.totalorder %s28, %s29
    %p43 = scmp.eq.s32.totalorder %s21, 1
    %p44 = por %p42, %p43
    %p46 = scmp.ne.s32.totalorder %s29, %s45
    %p47 = scmp.eq.s32.totalorder %s21, 0
    %p48 = por %p46, %p47
    %s49 = ssub.s32 %s15, %s22
    %p50 = scmp.eq.s32.totalorder %s49, 0
    %s52 = sadd.s32 %s51, 1
    %s53 = scalar_select %p50, %s51, %s52
    %p56 = pneg %p50
    %p57 = scmp.eq.s32.totalorder %s15, 1
    %p58 = por %p56, %p57
    %p59 = scmp.ne.s32.totalorder %s51, %s54
    %p60 = scmp.eq.s32.totalorder %s15, 0
    %p61 = por %p59, %p60
    %p62 = scmp.ne.s32.totalorder %s51, %s54
    %p63 = scmp.eq.s32.totalorder %s20, 1
    %p64 = por %p62, %p63
    %p65 = scmp.ne.s32.totalorder %s54, %s55
    %p66 = scmp.eq.s32.totalorder %s20, 0
    %p67 = por %p65, %p66
    %p68 = scmp.ne.s32.totalorder %s54, %s55
    %p69 = scmp.eq.s32.totalorder %s21, 1
    %p70 = por %p68, %p69
    %p72 = scmp.ne.s32.totalorder %s55, %s71
    %p73 = scmp.eq.s32.totalorder %s21, 0
    %p74 = por %p72, %p73
    %s76 = sadd.s32 %s75, 1
    %p79 = scmp.eq.s32.totalorder %s15, 1
    %p80 = scmp.ne.s32.totalorder %s75, %s77
    %p81 = scmp.eq.s32.totalorder %s15, 0
    %p82 = por %p80, %p81
    %p83 = scmp.ne.s32.totalorder %s75, %s77
    %p84 = scmp.eq.s32.totalorder %s20, 1
    %p85 = por %p83, %p84
    %p86 = scmp.ne.s32.totalorder %s77, %s78
    %p87 = scmp.eq.s32.totalorder %s20, 0
    %p88 = por %p86, %p87
    %p89 = scmp.ne.s32.totalorder %s77, %s78
    %p90 = scmp.eq.s32.totalorder %s21, 1
    %p91 = por %p89, %p90
    %p93 = scmp.ne.s32.totalorder %s78, %s92
    %p94 = scmp.eq.s32.totalorder %s21, 0
    %p95 = por %p93, %p94
    %s97 = sadd.s32 %s96, 1
    %p100 = scmp.eq.s32.totalorder %s15, 1
    %p101 = scmp.ne.s32.totalorder %s96, %s98
    %p102 = scmp.eq.s32.totalorder %s15, 0
    %p103 = por %p101, %p102
    %p104 = scmp.ne.s32.totalorder %s96, %s98
    %p105 = scmp.eq.s32.totalorder %s20, 1
    %p106 = por %p104, %p105
    %p107 = scmp.ne.s32.totalorder %s98, %s99
    %p108 = scmp.eq.s32.totalorder %s20, 0
    %p109 = por %p107, %p108
    %p110 = scmp.ne.s32.totalorder %s98, %s99
    %p111 = scmp.eq.s32.totalorder %s21, 1
    %p112 = por %p110, %p111
    %p114 = scmp.ne.s32.totalorder %s99, %s113
    %p115 = scmp.eq.s32.totalorder %s21, 0
    %p116 = por %p114, %p115
    %s118 = sadd.s32 %s117, 1
    %p121 = scmp.eq.s32.totalorder %s15, 1
    %p122 = scmp.ne.s32.totalorder %s117, %s119
    %p123 = scmp.eq.s32.totalorder %s15, 0
    %p124 = por %p122, %p123
    %p125 = scmp.ne.s32.totalorder %s117, %s119
    %p126 = scmp.eq.s32.totalorder %s20, 1
    %p127 = por %p125, %p126
    %p128 = scmp.ne.s32.totalorder %s119, %s120
    %p129 = scmp.eq.s32.totalorder %s20, 0
    %p130 = por %p128, %p129
    %p131 = scmp.ne.s32.totalorder %s119, %s120
    %p132 = scmp.eq.s32.totalorder %s21, 1
    %p133 = por %p131, %p132
    %p135 = scmp.ne.s32.totalorder %s120, %s134
    %p136 = scmp.eq.s32.totalorder %s21, 0
    %p137 = por %p135, %p136
    %s139 = sadd.s32 %s138, 1
    %p142 = scmp.eq.s32.totalorder %s15, 1
    %p143 = scmp.ne.s32.totalorder %s138, %s140
    %p144 = scmp.eq.s32.totalorder %s15, 0
    %p145 = por %p143, %p144
    %p146 = scmp.ne.s32.totalorder %s138, %s140
    %p147 = scmp.eq.s32.totalorder %s20, 1
    %p148 = por %p146, %p147
    %p149 = scmp.ne.s32.totalorder %s140, %s141
    %p150 = scmp.eq.s32.totalorder %s20, 0
    %p151 = por %p149, %p150
    %p152 = scmp.ne.s32.totalorder %s140, %s141
    %p153 = scmp.eq.s32.totalorder %s21, 1
    %p154 = por %p152, %p153
    %p156 = scmp.ne.s32.totalorder %s141, %s155
    %p157 = scmp.eq.s32.totalorder %s21, 0
    %p158 = por %p156, %p157
    %s160 = sadd.s32 %s159, 1
    %p163 = scmp.eq.s32.totalorder %s15, 1
    %p164 = scmp.ne.s32.totalorder %s159, %s161
    %p165 = scmp.eq.s32.totalorder %s15, 0
    %p166 = por %p164, %p165
    %p167 = scmp.ne.s32.totalorder %s159, %s161
    %p168 = scmp.eq.s32.totalorder %s20, 1
    %p169 = por %p167, %p168
    %p170 = scmp.ne.s32.totalorder %s161, %s162
    %p171 = scmp.eq.s32.totalorder %s20, 0
    %p172 = por %p170, %p171
    %p173 = scmp.ne.s32.totalorder %s161, %s162
    %p174 = scmp.eq.s32.totalorder %s21, 1
    %p175 = por %p173, %p174
    %p177 = scmp.ne.s32.totalorder %s162, %s176
    %p178 = scmp.eq.s32.totalorder %s21, 0
    %p179 = por %p177, %p178
    %s181 = sadd.s32 %s180, 1
    %p184 = scmp.eq.s32.totalorder %s15, 1
    %p185 = scmp.ne.s32.totalorder %s180, %s182
    %p186 = scmp.eq.s32.totalorder %s15, 0
    %p187 = por %p185, %p186
    %p188 = scmp.ne.s32.totalorder %s180, %s182
    %p189 = scmp.eq.s32.totalorder %s20, 1
    %p190 = por %p188, %p189
    %p191 = scmp.ne.s32.totalorder %s182, %s183
    %p192 = scmp.eq.s32.totalorder %s20, 0
    %p193 = por %p191, %p192
    %p194 = scmp.ne.s32.totalorder %s182, %s183
    %p195 = scmp.eq.s32.totalorder %s21, 1
    %p196 = por %p194, %p195
    %p198 = scmp.ne.s32.totalorder %s183, %s197
    %p199 = scmp.eq.s32.totalorder %s21, 0
    %p200 = por %p198, %p199
    %s202 = sadd.s32 %s201, 1
    %p205 = scmp.eq.s32.totalorder %s15, 1
    %p206 = scmp.ne.s32.totalorder %s201, %s203
    %p207 = scmp.eq.s32.totalorder %s15, 0
    %p208 = por %p206, %p207
    %p209 = scmp.ne.s32.totalorder %s201, %s203
    %p210 = scmp.eq.s32.totalorder %s20, 1
    %p211 = por %p209, %p210
    %p212 = scmp.ne.s32.totalorder %s203, %s204
    %p213 = scmp.eq.s32.totalorder %s20, 0
    %p214 = por %p212, %p213
    %p215 = scmp.ne.s32.totalorder %s203, %s204
    %p216 = scmp.eq.s32.totalorder %s21, 1
    %p217 = por %p215, %p216
    %p219 = scmp.ne.s32.totalorder %s204, %s218
    %p220 = scmp.eq.s32.totalorder %s21, 0
    %p221 = por %p219, %p220
    %s222 = ssub.s32 %s15, %s22
    %p223 = scmp.eq.s32.totalorder %s222, 0
    %s225 = sadd.s32 %s224, 1
    %s226 = scalar_select %p223, %s224, %s225
    %p229 = pneg %p223
    %p230 = scmp.eq.s32.totalorder %s15, 1
    %p231 = por %p229, %p230
    %p232 = scmp.ne.s32.totalorder %s224, %s227
    %p233 = scmp.eq.s32.totalorder %s15, 0
    %p234 = por %p232, %p233
    %p235 = scmp.ne.s32.totalorder %s224, %s227
    %p236 = scmp.eq.s32.totalorder %s20, 1
    %p237 = por %p235, %p236
    %p238 = scmp.ne.s32.totalorder %s227, %s228
    %p239 = scmp.eq.s32.totalorder %s20, 0
    %p240 = por %p238, %p239
    %p241 = scmp.ne.s32.totalorder %s227, %s228
    %p242 = scmp.eq.s32.totalorder %s21, 1
    %p243 = por %p241, %p242
    %p245 = scmp.ne.s32.totalorder %s228, %s244
    %p246 = scmp.eq.s32.totalorder %s21, 0
    %p247 = por %p245, %p246
    %p248 = scmp.le.s32.totalorder 1, %s15
    %p249 = scmp.lt.s32.totalorder %s15, 3
    %p250 = pnand %p248, %p249
    %p251 = pneg %p250
    // Predicated region
    $region9: #{tpu_custom_call.1} parent=5 // pred_check
      _
    $region10: #{tpu_custom_call.1} parent=5 // pred_check_branch
      %253 = sbr.rel (%p250) target = $region12
    $region11: #{tpu_custom_call.1} parent=5 // pred_region
      %s254 = ssub.s32 %s15, 1
      // Predicated region
      $region13: #{tpu_custom_call.1} parent=11 // pred_check
        %p255 = pneg %p88
      $region14: #{tpu_custom_call.1} parent=11 // pred_check_branch
        %257 = sbr.rel (%p255) target = $region16
      $region15: #{tpu_custom_call.1} parent=11 // pred_region
        _
      $region16: #{tpu_custom_call.1} parent=11 // pred_fallthru
        _
      // Predicated region
      $region17: #{tpu_custom_call.1} parent=11 // pred_check
        %p258 = pneg %p109
      $region18: #{tpu_custom_call.1} parent=11 // pred_check_branch
        %260 = sbr.rel (%p258) target = $region20
      $region19: #{tpu_custom_call.1} parent=11 // pred_region
        _
      $region20: #{tpu_custom_call.1} parent=11 // pred_fallthru
        _
      // Predicated region
      $region21: #{tpu_custom_call.1} parent=11 // pred_check
        %p261 = pneg %p130
      $region22: #{tpu_custom_call.1} parent=11 // pred_check_branch
        %263 = sbr.rel (%p261) target = $region24
      $region23: #{tpu_custom_call.1} parent=11 // pred_region
        _
      $region24: #{tpu_custom_call.1} parent=11 // pred_fallthru
        _
      // Predicated region
      $region25: #{tpu_custom_call.1} parent=11 // pred_check
        %p264 = pneg %p151
      $region26: #{tpu_custom_call.1} parent=11 // pred_check_branch
        %266 = sbr.rel (%p264) target = $region28
      $region27: #{tpu_custom_call.1} parent=11 // pred_region
        _
      $region28: #{tpu_custom_call.1} parent=11 // pred_fallthru
        _
      // Predicated region
      $region29: #{tpu_custom_call.1} parent=11 // pred_check
        %p267 = pneg %p172
      $region30: #{tpu_custom_call.1} parent=11 // pred_check_branch
        %269 = sbr.rel (%p267) target = $region32
      $region31: #{tpu_custom_call.1} parent=11 // pred_region
        _
      $region32: #{tpu_custom_call.1} parent=11 // pred_fallthru
        _
      // Predicated region
      $region33: #{tpu_custom_call.1} parent=11 // pred_check
        %p270 = pneg %p193
      $region34: #{tpu_custom_call.1} parent=11 // pred_check_branch
        %272 = sbr.rel (%p270) target = $region36
      $region35: #{tpu_custom_call.1} parent=11 // pred_region
        _
      $region36: #{tpu_custom_call.1} parent=11 // pred_fallthru
        _
      // Predicated region
      $region37: #{tpu_custom_call.1} parent=11 // pred_check
        %p273 = pneg %p214
      $region38: #{tpu_custom_call.1} parent=11 // pred_check_branch
        %275 = sbr.rel (%p273) target = $region40
      $region39: #{tpu_custom_call.1} parent=11 // pred_region
        _
      $region40: #{tpu_custom_call.1} parent=11 // pred_fallthru
        _
    $region12: #{tpu_custom_call.1} parent=5 // pred_fallthru
      _
    %p276 = scmp.lt.s32.totalorder %s15, 2
    // Predicated region
    $region41: #{tpu_custom_call.1} parent=5 // pred_check
      %p277 = pneg %p276
    $region42: #{tpu_custom_call.1} parent=5 // pred_check_branch
      %279 = sbr.rel (%p277) target = $region44
    $region43: #{tpu_custom_call.1} parent=5 // pred_region
      // Predicated region
      $region45: #{tpu_custom_call.1} parent=43 // pred_check
        %p280 = pneg %p35
      $region46: #{tpu_custom_call.1} parent=43 // pred_check_branch
        %282 = sbr.rel (%p280) target = $region48
      $region47: #{tpu_custom_call.1} parent=43 // pred_region
        %s283 = smul.u32 16, %s15
        %p284 = scmp.lt.s32.totalorder %s283, 31
        %s285 = scalar_select %p284, %s283, 31
        %s286 = smul.addr %s285, 8
        %s287 = scalar_lea.vmem %s0, %s286
        %s288 = smul.u32 16, %s15
      $region48: #{tpu_custom_call.1} parent=43 // pred_fallthru
        _
      // Predicated region
      $region49: #{tpu_custom_call.1} parent=43 // pred_check
        %p289 = pneg %p61
      $region50: #{tpu_custom_call.1} parent=43 // pred_check_branch
        %291 = sbr.rel (%p289) target = $region52
      $region51: #{tpu_custom_call.1} parent=43 // pred_region
        %s292 = smul.u32 16, %s15
        %p293 = scmp.lt.s32.totalorder %s292, 31
        %s294 = scalar_select %p293, %s292, 31
        %s295 = smul.addr %s294, 8
        %s296 = scalar_lea.vmem %s1, %s295
        %s297 = smul.u32 16, %s15
      $region52: #{tpu_custom_call.1} parent=43 // pred_fallthru
        _
    $region44: #{tpu_custom_call.1} parent=5 // pred_fallthru
      _
    %p298 = scmp.le.s32.totalorder 1, %s15
    %p299 = scmp.lt.s32.totalorder %s15, 3
    %p300 = pnand %p298, %p299
    %p301 = pneg %p300
    // Predicated region
    $region53: #{tpu_custom_call.1} parent=5 // pred_check
      _
    $region54: #{tpu_custom_call.1} parent=5 // pred_check_branch
      %303 = sbr.rel (%p300) target = $region56
    $region55: #{tpu_custom_call.1} parent=5 // pred_region
      %s304 = ssub.s32 %s15, 1
      %s305 = smul.u32 16, %s20
      %p306 = scmp.lt.s32.totalorder %s305, 31
      %s307 = scalar_select %p306, %s305, 31
      %s308 = smul.addr %s307, 8
      %s309 = scalar_lea.vmem %s0, %s308
      %p310 = pneg %p41
      %p311 = pneg %p38
      %s312 = smul.u32 16, %s20
      %p313 = scmp.lt.s32.totalorder %s312, 31
      %s314 = scalar_select %p313, %s312, 31
      %s315 = smul.addr %s314, 8
      %s316 = scalar_lea.vmem %s1, %s315
      %p317 = pneg %p67
      %p318 = pneg %p64
      %p319 = pneg %p88
      %p320 = pneg %p85
      %p321 = pneg %p109
      %p322 = pneg %p106
      %p323 = pneg %p130
      %p324 = pneg %p127
      %p325 = pneg %p151
      %p326 = pneg %p148
      %p327 = pneg %p172
      %p328 = pneg %p169
      %p329 = pneg %p193
      %p330 = pneg %p190
      %p331 = pneg %p214
      %p332 = pneg %p211
      %p333 = pneg %p240
      %p334 = pneg %p237
      %s335 = smul.u32 16, %s20
      %p336 = scmp.lt.s32.totalorder %s335, 31
      %s337 = scalar_select %p336, %s335, 31
      %s338 = smul.addr %s337, 8
      %s339 = scalar_lea.vmem %s9, %s338
      %s340 = smul.u32 16, %s20
      %p341 = scmp.lt.s32.totalorder %s340, 31
      %s342 = scalar_select %p341, %s340, 31
      %s343 = smul.addr %s342, 8
      %s344 = scalar_lea.vmem %s0, %s343
      %s345 = smul.u32 16, %s20
      %s346 = smul.u32 16, %s20
      %p347 = scmp.lt.s32.totalorder %s346, 31
      %s348 = scalar_select %p347, %s346, 31
      %s349 = smul.addr %s348, 8
      %s350 = scalar_lea.vmem %s1, %s349
      %s351 = smul.u32 16, %s20
      %s352 = smul.u32 16, %s20
      %p353 = scmp.lt.s32.totalorder %s352, 31
      %s354 = scalar_select %p353, %s352, 31
      %s355 = smul.addr %s354, 8
      %s356 = scalar_lea.vmem %s9, %s355
      %s357 = smul.u32 16, %s20
      %v358 = vld [vmem:[%s344] sm:$0xff]
      %v359 = vld [vmem:[%s344 + $0x8] sm:$0xff]
      %v360 = vld [vmem:[%s344 + $0x10] sm:$0xff]
      %v361 = vld [vmem:[%s344 + $0x18] sm:$0xff]
      %v362 = vld [vmem:[%s344 + $0x20] sm:$0xff]
      %v363 = vld [vmem:[%s344 + $0x28] sm:$0xff]
      %v364 = vld [vmem:[%s344 + $0x30] sm:$0xff]
      %v365 = vld [vmem:[%s344 + $0x38] sm:$0xff]
      %v366 = vld [vmem:[%s344 + $0x40] sm:$0xff]
      %v367 = vld [vmem:[%s344 + $0x48] sm:$0xff]
      %v368 = vld [vmem:[%s344 + $0x50] sm:$0xff]
      %v369 = vld [vmem:[%s344 + $0x58] sm:$0xff]
      %v370 = vld [vmem:[%s344 + $0x60] sm:$0xff]
      %v371 = vld [vmem:[%s344 + $0x68] sm:$0xff]
      %v372 = vld [vmem:[%s344 + $0x70] sm:$0xff]
      %v373 = vld [vmem:[%s344 + $0x78] sm:$0xff]
      %v374 = vld [vmem:[%s2] sm:$0xff]
      %v375 = vld [vmem:[%s2 + $0x8] sm:$0xff]
      %v376 = vld [vmem:[%s2 + $0x10] sm:$0xff]
      %v377 = vld [vmem:[%s2 + $0x18] sm:$0xff]
      %v378 = vld [vmem:[%s350] sm:$0xff]
      %v379 = vld [vmem:[%s350 + $0x8] sm:$0xff]
      %v380 = vld [vmem:[%s350 + $0x10] sm:$0xff]
      %v381 = vld [vmem:[%s350 + $0x18] sm:$0xff]
      %v382 = vld [vmem:[%s350 + $0x20] sm:$0xff]
      %v383 = vld [vmem:[%s350 + $0x28] sm:$0xff]
      %v384 = vld [vmem:[%s350 + $0x30] sm:$0xff]
      %v385 = vld [vmem:[%s350 + $0x38] sm:$0xff]
      %v386 = vld [vmem:[%s350 + $0x40] sm:$0xff]
      %v387 = vld [vmem:[%s350 + $0x48] sm:$0xff]
      %v388 = vld [vmem:[%s350 + $0x50] sm:$0xff]
      %v389 = vld [vmem:[%s350 + $0x58] sm:$0xff]
      %v390 = vld [vmem:[%s350 + $0x60] sm:$0xff]
      %v391 = vld [vmem:[%s350 + $0x68] sm:$0xff]
      %v392 = vld [vmem:[%s350 + $0x70] sm:$0xff]
      %v393 = vld [vmem:[%s350 + $0x78] sm:$0xff]
      %v394 = vld [vmem:[%s3] sm:$0xff]
      %v395 = vld [vmem:[%s3 + $0x8] sm:$0xff]
      %vm396 = vcmask 64512
      %v398 = vsel %vm396, %v378, 0
      %v401 = vsel %vm396, %v379, 0
      %v404 = vsel %vm396, %v380, 0
      %v407 = vsel %vm396, %v381, 0
      %v410 = vsel %vm396, %v382, 0
      %v413 = vsel %vm396, %v383, 0
      %v416 = vsel %vm396, %v384, 0
      %v419 = vsel %vm396, %v385, 0
      %v422 = vsel %vm396, %v386, 0
      %v425 = vsel %vm396, %v387, 0
      %v428 = vsel %vm396, %v388, 0
      %v431 = vsel %vm396, %v389, 0
      %v434 = vsel %vm396, %v390, 0
      %v437 = vsel %vm396, %v391, 0
      %v440 = vsel %vm396, %v392, 0
      %v443 = vsel %vm396, %v393, 0
      %445 = vmatprep.subr.mxu0 %v395
      %446 = vmatpush1.msra.mxu0 %v394
      %447 = vmatprep.subr.mxu0 0.0
      %448 = vmatpush1.msra.mxu0 0.0
      %449 = vmatprep.subr.mxu0 0.0
      %450 = vmatpush1.msra.mxu0 0.0
      %451 = vmatprep.subr.mxu0 0.0
      %452 = vmatpush1.msra.mxu0 0.0
      %453 = vmatprep.subr.mxu0 0.0
      %454 = vmatpush1.msra.mxu0 0.0
      %455 = vmatprep.subr.mxu0 0.0
      %456 = vmatpush1.msra.mxu0 0.0
      %457 = vmatprep.subr.mxu0 0.0
      %458 = vmatpush1.msra.mxu0 0.0
      %459 = vmatprep.subr.mxu0 0.0
      %460 = vmatpush1.msra.mxu0 0.0
      %461 = vmatprep.subr.mxu0 0.0
      %462 = vmatpush1.msra.mxu0 0.0
      %463 = vmatprep.subr.mxu0 0.0
      %464 = vmatpush1.msra.mxu0 0.0
      %465 = vmatprep.subr.mxu0 0.0
      %466 = vmatpush1.msra.mxu0 0.0
      %467 = vmatprep.subr.mxu0 0.0
      %468 = vmatpush1.msra.mxu0 0.0
      %469 = vmatprep.subr.mxu0 0.0
      %470 = vmatpush1.msra.mxu0 0.0
      %471 = vmatprep.subr.mxu0 0.0
      %472 = vmatpush1.msra.mxu0 0.0
      %473 = vmatprep.subr.mxu0 0.0
      %474 = vmatpush1.msra.mxu0 0.0
      %475 = vmatprep.subr.mxu0 0.0
      %476 = vmatpush1.msra.mxu0 0.0
      %477 = vmatprep.subr.mxu0 0.0
      %478 = vmatpush1.msra.mxu0 0.0
      %479 = vmatprep.subr.mxu0 0.0
      %480 = vmatpush1.msra.mxu0 0.0
      %481 = vmatprep.subr.mxu0 0.0
      %482 = vmatpush1.msra.mxu0 0.0
      %483 = vmatprep.subr.mxu0 0.0
      %484 = vmatpush1.msra.mxu0 0.0
      %485 = vmatprep.subr.mxu0 0.0
      %486 = vmatpush1.msra.mxu0 0.0
      %487 = vmatprep.subr.mxu0 0.0
      %488 = vmatpush1.msra.mxu0 0.0
      %489 = vmatprep.subr.mxu0 0.0
      %490 = vmatpush1.msra.mxu0 0.0
      %491 = vmatprep.subr.mxu0 0.0
      %492 = vmatpush1.msra.mxu0 0.0
      %493 = vmatprep.subr.mxu0 0.0
      %494 = vmatpush1.msra.mxu0 0.0
      %495 = vmatprep.subr.mxu0 0.0
      %496 = vmatpush1.msra.mxu0 0.0
      %497 = vmatprep.subr.mxu0 0.0
      %498 = vmatpush1.msra.mxu0 0.0
      %499 = vmatprep.subr.mxu0 0.0
      %500 = vmatpush1.msra.mxu0 0.0
      %501 = vmatprep.subr.mxu0 0.0
      %502 = vmatpush1.msra.mxu0 0.0
      %503 = vmatprep.subr.mxu0 0.0
      %504 = vmatpush1.msra.mxu0 0.0
      %505 = vmatprep.subr.mxu0 0.0
      %506 = vmatpush1.msra.mxu0 0.0
      %507 = vmatprep.subr.mxu0 0.0
      %508 = vmatpush1.msra.mxu0 0.0
      %509 = vmatprep.mubr.f32.mxu0 0.0
      %510 = vmatmul.mubr.f32.gmra.mrb[0].mxu0 %v398
      %v511 = vpop.f32.mrb[0].mxu0
      %v512 = vadd.f32 0.0, %v511
      %v513 = vpop.f32.mrb[0].mxu0
      %v514 = vadd.f32 0.0, %v513
      %515 = vmatprep.mubr.f32.mxu0 0.0
      %516 = vmatmul.mubr.f32.gmra.mrb[0].mxu0 %v401
      %v517 = vpop.f32.mrb[0].mxu0
      %v518 = vadd.f32 0.0, %v517
      %v519 = vpop.f32.mrb[0].mxu0
      %v520 = vadd.f32 0.0, %v519
      %521 = vmatprep.mubr.f32.mxu0 0.0
      %522 = vmatmul.mubr.f32.gmra.mrb[0].mxu0 %v404
      %v523 = vpop.f32.mrb[0].mxu0
      %v524 = vadd.f32 0.0, %v523
      %v525 = vpop.f32.mrb[0].mxu0
      %v526 = vadd.f32 0.0, %v525
      %527 = vmatprep.mubr.f32.mxu0 0.0
      %528 = vmatmul.mubr.f32.gmra.mrb[0].mxu0 %v407
      %v529 = vpop.f32.mrb[0].mxu0
      %v530 = vadd.f32 0.0, %v529
      %v531 = vpop.f32.mrb[0].mxu0
      %v532 = vadd.f32 0.0, %v531
      %533 = vmatprep.mubr.f32.mxu0 0.0
      %534 = vmatmul.mubr.f32.gmra.mrb[0].mxu0 %v410
      %v535 = vpop.f32.mrb[0].mxu0
      %v536 = vadd.f32 0.0, %v535
      %v537 = vpop.f32.mrb[0].mxu0
      %v538 = vadd.f32 0.0, %v537
      %539 = vmatprep.mubr.f32.mxu0 0.0
      %540 = vmatmul.mubr.f32.gmra.mrb[0].mxu0 %v413
      %v541 = vpop.f32.mrb[0].mxu0
      %v542 = vadd.f32 0.0, %v541
      %v543 = vpop.f32.mrb[0].mxu0
      %v544 = vadd.f32 0.0, %v543
      %545 = vmatprep.mubr.f32.mxu0 0.0
      %546 = vmatmul.mubr.f32.gmra.mrb[0].mxu0 %v416
      %v547 = vpop.f32.mrb[0].mxu0
      %v548 = vadd.f32 0.0, %v547
      %v549 = vpop.f32.mrb[0].mxu0
      %v550 = vadd.f32 0.0, %v549
      %551 = vmatprep.mubr.f32.mxu0 0.0
      %552 = vmatmul.mubr.f32.gmra.mrb[0].mxu0 %v419
      %v553 = vpop.f32.mrb[0].mxu0
      %v554 = vadd.f32 0.0, %v553
      %v555 = vpop.f32.mrb[0].mxu0
      %v556 = vadd.f32 0.0, %v555
      %557 = vmatprep.mubr.f32.mxu0 0.0
      %558 = vmatmul.mubr.f32.gmra.mrb[0].mxu0 %v422
      %v559 = vpop.f32.mrb[0].mxu0
      %v560 = vadd.f32 0.0, %v559
      %v561 = vpop.f32.mrb[0].mxu0
      %v562 = vadd.f32 0.0, %v561
      %563 = vmatprep.mubr.f32.mxu0 0.0
      %564 = vmatmul.mubr.f32.gmra.mrb[0].mxu0 %v425
      %v565 = vpop.f32.mrb[0].mxu0
      %v566 = vadd.f32 0.0, %v565
      %v567 = vpop.f32.mrb[0].mxu0
      %v568 = vadd.f32 0.0, %v567
      %569 = vmatprep.mubr.f32.mxu0 0.0
      %570 = vmatmul.mubr.f32.gmra.mrb[0].mxu0 %v428
      %v571 = vpop.f32.mrb[0].mxu0
      %v572 = vadd.f32 0.0, %v571
      %v573 = vpop.f32.mrb[0].mxu0
      %v574 = vadd.f32 0.0, %v573
      %575 = vmatprep.mubr.f32.mxu0 0.0
      %576 = vmatmul.mubr.f32.gmra.mrb[0].mxu0 %v431
      %v577 = vpop.f32.mrb[0].mxu0
      %v578 = vadd.f32 0.0, %v577
      %v579 = vpop.f32.mrb[0].mxu0
      %v580 = vadd.f32 0.0, %v579
      %581 = vmatprep.mubr.f32.mxu0 0.0
      %582 = vmatmul.mubr.f32.gmra.mrb[0].mxu0 %v434
      %v583 = vpop.f32.mrb[0].mxu0
      %v584 = vadd.f32 0.0, %v583
      %v585 = vpop.f32.mrb[0].mxu0
      %v586 = vadd.f32 0.0, %v585
      %587 = vmatprep.mubr.f32.mxu0 0.0
      %588 = vmatmul.mubr.f32.gmra.mrb[0].mxu0 %v437
      %v589 = vpop.f32.mrb[0].mxu0
      %v590 = vadd.f32 0.0, %v589
      %v591 = vpop.f32.mrb[0].mxu0
      %v592 = vadd.f32 0.0, %v591
      %593 = vmatprep.mubr.f32.mxu0 0.0
      %594 = vmatmul.mubr.f32.gmra.mrb[0].mxu0 %v440
      %v595 = vpop.f32.mrb[0].mxu0
      %v596 = vadd.f32 0.0, %v595
      %v597 = vpop.f32.mrb[0].mxu0
      %v598 = vadd.f32 0.0, %v597
      %599 = vmatprep.mubr.f32.mxu0 0.0
      %600 = vmatmul.mubr.f32.gmra.mrb[0].mxu0 %v443
      %v601 = vpop.f32.mrb[0].mxu0
      %v602 = vadd.f32 0.0, %v601
      %v603 = vpop.f32.mrb[0].mxu0
      %v604 = vadd.f32 0.0, %v603
      %605 = vdwg.mxu0
      %vm606 = vcmask 130048
      %v608 = vsel %vm606, %v358, 0
      %v611 = vsel %vm606, %v359, 0
      %v614 = vsel %vm606, %v360, 0
      %v617 = vsel %vm606, %v361, 0
      %v620 = vsel %vm606, %v362, 0
      %v623 = vsel %vm606, %v363, 0
      %v626 = vsel %vm606, %v364, 0
      %v629 = vsel %vm606, %v365, 0
      %v632 = vsel %vm606, %v366, 0
      %v635 = vsel %vm606, %v367, 0
      %v638 = vsel %vm606, %v368, 0
      %v641 = vsel %vm606, %v369, 0
      %v644 = vsel %vm606, %v370, 0
      %v647 = vsel %vm606, %v371, 0
      %v650 = vsel %vm606, %v372, 0
      %v653 = vsel %vm606, %v373, 0
      %655 = vmatprep.subr.mxu0 %v375
      %656 = vmatpush1.msra.mxu0 %v374
      %657 = vmatprep.subr.mxu0 %v377
      %658 = vmatpush1.msra.mxu0 %v376
      %659 = vmatprep.subr.mxu0 0.0
      %660 = vmatpush1.msra.mxu0 0.0
      %661 = vmatprep.subr.mxu0 0.0
      %662 = vmatpush1.msra.mxu0 0.0
      %663 = vmatprep.subr.mxu0 0.0
      %664 = vmatpush1.msra.mxu0 0.0
      %665 = vmatprep.subr.mxu0 0.0
      %666 = vmatpush1.msra.mxu0 0.0
      %667 = vmatprep.subr.mxu0 0.0
      %668 = vmatpush1.msra.mxu0 0.0
      %669 = vmatprep.subr.mxu0 0.0
      %670 = vmatpush1.msra.mxu0 0.0
      %671 = vmatprep.subr.mxu0 0.0
      %672 = vmatpush1.msra.mxu0 0.0
      %673 = vmatprep.subr.mxu0 0.0
      %674 = vmatpush1.msra.mxu0 0.0
      %675 = vmatprep.subr.mxu0 0.0
      %676 = vmatpush1.msra.mxu0 0.0
      %677 = vmatprep.subr.mxu0 0.0
      %678 = vmatpush1.msra.mxu0 0.0
      %679 = vmatprep.subr.mxu0 0.0
      %680 = vmatpush1.msra.mxu0 0.0
      %681 = vmatprep.subr.mxu0 0.0
      %682 = vmatpush1.msra.mxu0 0.0
      %683 = vmatprep.subr.mxu0 0.0
      %684 = vmatpush1.msra.mxu0 0.0
      %685 = vmatprep.subr.mxu0 0.0
      %686 = vmatpush1.msra.mxu0 0.0
      %687 = vmatprep.subr.mxu0 0.0
      %688 = vmatpush1.msra.mxu0 0.0
      %689 = vmatprep.subr.mxu0 0.0
      %690 = vmatpush1.msra.mxu0 0.0
      %691 = vmatprep.subr.mxu0 0.0
      %692 = vmatpush1.msra.mxu0 0.0
      %693 = vmatprep.subr.mxu0 0.0
      %694 = vmatpush1.msra.mxu0 0.0
      %695 = vmatprep.subr.mxu0 0.0
      %696 = vmatpush1.msra.mxu0 0.0
      %697 = vmatprep.subr.mxu0 0.0
      %698 = vmatpush1.msra.mxu0 0.0
      %699 = vmatprep.subr.mxu0 0.0
      %700 = vmatpush1.msra.mxu0 0.0
      %701 = vmatprep.subr.mxu0 0.0
      %702 = vmatpush1.msra.mxu0 0.0
      %703 = vmatprep.subr.mxu0 0.0
      %704 = vmatpush1.msra.mxu0 0.0
      %705 = vmatprep.subr.mxu0 0.0
      %706 = vmatpush1.msra.mxu0 0.0
      %707 = vmatprep.subr.mxu0 0.0
      %708 = vmatpush1.msra.mxu0 0.0
      %709 = vmatprep.subr.mxu0 0.0
      %710 = vmatpush1.msra.mxu0 0.0
      %711 = vmatprep.subr.mxu0 0.0
      %712 = vmatpush1.msra.mxu0 0.0
      %713 = vmatprep.subr.mxu0 0.0
      %714 = vmatpush1.msra.mxu0 0.0
      %715 = vmatprep.subr.mxu0 0.0
      %716 = vmatpush1.msra.mxu0 0.0
      %717 = vmatprep.subr.mxu0 0.0
      %718 = vmatpush1.msra.mxu0 0.0
      %719 = vmatprep.mubr.f32.mxu0 0.0
      %720 = vmatmul.mubr.f32.gmra.mrb[0].mxu0 %v608
      %v721 = vpop.f32.mrb[0].mxu0
      %v722 = vadd.f32 %v512, %v721
      %v723 = vpop.f32.mrb[0].mxu0
      %v724 = vadd.f32 %v514, %v723
      %725 = vmatprep.mubr.f32.mxu0 0.0
      %726 = vmatmul.mubr.f32.gmra.mrb[0].mxu0 %v611
      %v727 = vpop.f32.mrb[0].mxu0
      %v728 = vadd.f32 %v518, %v727
      %v729 = vpop.f32.mrb[0].mxu0
      %v730 = vadd.f32 %v520, %v729
      %731 = vmatprep.mubr.f32.mxu0 0.0
      %732 = vmatmul.mubr.f32.gmra.mrb[0].mxu0 %v614
      %v733 = vpop.f32.mrb[0].mxu0
      %v734 = vadd.f32 %v524, %v733
      %v735 = vpop.f32.mrb[0].mxu0
      %v736 = vadd.f32 %v526, %v735
      %737 = vmatprep.mubr.f32.mxu0 0.0
      %738 = vmatmul.mubr.f32.gmra.mrb[0].mxu0 %v617
      %v739 = vpop.f32.mrb[0].mxu0
      %v740 = vadd.f32 %v530, %v739
      %v741 = vpop.f32.mrb[0].mxu0
      %v742 = vadd.f32 %v532, %v741
      %743 = vmatprep.mubr.f32.mxu0 0.0
      %744 = vmatmul.mubr.f32.gmra.mrb[0].mxu0 %v620
      %v745 = vpop.f32.mrb[0].mxu0
      %v746 = vadd.f32 %v536, %v745
      %v747 = vpop.f32.mrb[0].mxu0
      %v748 = vadd.f32 %v538, %v747
      %749 = vmatprep.mubr.f32.mxu0 0.0
      %750 = vmatmul.mubr.f32.gmra.mrb[0].mxu0 %v623
      %v751 = vpop.f32.mrb[0].mxu0
      %v752 = vadd.f32 %v542, %v751
      %v753 = vpop.f32.mrb[0].mxu0
      %v754 = vadd.f32 %v544, %v753
      %755 = vmatprep.mubr.f32.mxu0 0.0
      %756 = vmatmul.mubr.f32.gmra.mrb[0].mxu0 %v626
      %v757 = vpop.f32.mrb[0].mxu0
      %v758 = vadd.f32 %v548, %v757
      %v759 = vpop.f32.mrb[0].mxu0
      %v760 = vadd.f32 %v550, %v759
      %761 = vmatprep.mubr.f32.mxu0 0.0
      %762 = vmatmul.mubr.f32.gmra.mrb[0].mxu0 %v629
      %v763 = vpop.f32.mrb[0].mxu0
      %v764 = vadd.f32 %v554, %v763
      %v765 = vpop.f32.mrb[0].mxu0
      %v766 = vadd.f32 %v556, %v765
      %767 = vmatprep.mubr.f32.mxu0 0.0
      %768 = vmatmul.mubr.f32.gmra.mrb[0].mxu0 %v632
      %v769 = vpop.f32.mrb[0].mxu0
      %v770 = vadd.f32 %v560, %v769
      %v771 = vpop.f32.mrb[0].mxu0
      %v772 = vadd.f32 %v562, %v771
      %773 = vmatprep.mubr.f32.mxu0 0.0
      %774 = vmatmul.mubr.f32.gmra.mrb[0].mxu0 %v635
      %v775 = vpop.f32.mrb[0].mxu0
      %v776 = vadd.f32 %v566, %v775
      %v777 = vpop.f32.mrb[0].mxu0
      %v778 = vadd.f32 %v568, %v777
      %779 = vmatprep.mubr.f32.mxu0 0.0
      %780 = vmatmul.mubr.f32.gmra.mrb[0].mxu0 %v638
      %v781 = vpop.f32.mrb[0].mxu0
      %v782 = vadd.f32 %v572, %v781
      %v783 = vpop.f32.mrb[0].mxu0
      %v784 = vadd.f32 %v574, %v783
      %785 = vmatprep.mubr.f32.mxu0 0.0
      %786 = vmatmul.mubr.f32.gmra.mrb[0].mxu0 %v641
      %v787 = vpop.f32.mrb[0].mxu0
      %v788 = vadd.f32 %v578, %v787
      %v789 = vpop.f32.mrb[0].mxu0
      %v790 = vadd.f32 %v580, %v789
      %791 = vmatprep.mubr.f32.mxu0 0.0
      %792 = vmatmul.mubr.f32.gmra.mrb[0].mxu0 %v644
      %v793 = vpop.f32.mrb[0].mxu0
      %v794 = vadd.f32 %v584, %v793
      %v795 = vpop.f32.mrb[0].mxu0
      %v796 = vadd.f32 %v586, %v795
      %797 = vmatprep.mubr.f32.mxu0 0.0
      %798 = vmatmul.mubr.f32.gmra.mrb[0].mxu0 %v647
      %v799 = vpop.f32.mrb[0].mxu0
      %v800 = vadd.f32 %v590, %v799
      %v801 = vpop.f32.mrb[0].mxu0
      %v802 = vadd.f32 %v592, %v801
      %803 = vmatprep.mubr.f32.mxu0 0.0
      %804 = vmatmul.mubr.f32.gmra.mrb[0].mxu0 %v650
      %v805 = vpop.f32.mrb[0].mxu0
      %v806 = vadd.f32 %v596, %v805
      %v807 = vpop.f32.mrb[0].mxu0
      %v808 = vadd.f32 %v598, %v807
      %809 = vmatprep.mubr.f32.mxu0 0.0
      %810 = vmatmul.mubr.f32.gmra.mrb[0].mxu0 %v653
      %v811 = vpop.f32.mrb[0].mxu0
      %v812 = vadd.f32 %v602, %v811
      %v813 = vpop.f32.mrb[0].mxu0
      %v814 = vadd.f32 %v604, %v813
      %815 = vdwg.mxu0
      %v816 = vld [vmem:[%s4] sm:$0x3]
      %v818 = vlaneseq
      %v819 = vshrl.u32 %v818, 7
      %v820 = vsub.s32 0, %v819
      %v821 = vrot.slane %v816, %v820
      %v822 = vlaneseq
      %v823 = vshrl.u32 %v822, 7
      %v824 = vsub.s32 1, %v823
      %v825 = vrot.slane %v816, %v824
      %v828 = vadd.f32 %v722, %v821
      %v829 = vadd.f32 %v724, %v825
      %v830 = vadd.f32 %v728, %v821
      %v831 = vadd.f32 %v730, %v825
      %v832 = vadd.f32 %v734, %v821
      %v833 = vadd.f32 %v736, %v825
      %v834 = vadd.f32 %v740, %v821
      %v835 = vadd.f32 %v742, %v825
      %v836 = vadd.f32 %v746, %v821
      %v837 = vadd.f32 %v748, %v825
      %v838 = vadd.f32 %v752, %v821
      %v839 = vadd.f32 %v754, %v825
      %v840 = vadd.f32 %v758, %v821
      %v841 = vadd.f32 %v760, %v825
      %v842 = vadd.f32 %v764, %v821
      %v843 = vadd.f32 %v766, %v825
      %v844 = vadd.f32 %v770, %v821
      %v845 = vadd.f32 %v772, %v825
      %v846 = vadd.f32 %v776, %v821
      %v847 = vadd.f32 %v778, %v825
      %v848 = vadd.f32 %v782, %v821
      %v849 = vadd.f32 %v784, %v825
      %v850 = vadd.f32 %v788, %v821
      %v851 = vadd.f32 %v790, %v825
      %v852 = vadd.f32 %v794, %v821
      %v853 = vadd.f32 %v796, %v825
      %v854 = vadd.f32 %v800, %v821
      %v855 = vadd.f32 %v802, %v825
      %v856 = vadd.f32 %v806, %v821
      %v857 = vadd.f32 %v808, %v825
      %v858 = vadd.f32 %v812, %v821
      %v859 = vadd.f32 %v814, %v825
      %v860 = vmax.f32 %v828, 0.0
      %v861 = vmax.f32 %v829, 0.0
      %v862 = vmax.f32 %v830, 0.0
      %v863 = vmax.f32 %v831, 0.0
      %v864 = vmax.f32 %v832, 0.0
      %v865 = vmax.f32 %v833, 0.0
      %v866 = vmax.f32 %v834, 0.0
      %v867 = vmax.f32 %v835, 0.0
      %v868 = vmax.f32 %v836, 0.0
      %v869 = vmax.f32 %v837, 0.0
      %v870 = vmax.f32 %v838, 0.0
      %v871 = vmax.f32 %v839, 0.0
      %v872 = vmax.f32 %v840, 0.0
      %v873 = vmax.f32 %v841, 0.0
      %v874 = vmax.f32 %v842, 0.0
      %v875 = vmax.f32 %v843, 0.0
      %v876 = vmax.f32 %v844, 0.0
      %v877 = vmax.f32 %v845, 0.0
      %v878 = vmax.f32 %v846, 0.0
      %v879 = vmax.f32 %v847, 0.0
      %v880 = vmax.f32 %v848, 0.0
      %v881 = vmax.f32 %v849, 0.0
      %v882 = vmax.f32 %v850, 0.0
      %v883 = vmax.f32 %v851, 0.0
      %v884 = vmax.f32 %v852, 0.0
      %v885 = vmax.f32 %v853, 0.0
      %v886 = vmax.f32 %v854, 0.0
      %v887 = vmax.f32 %v855, 0.0
      %v888 = vmax.f32 %v856, 0.0
      %v889 = vmax.f32 %v857, 0.0
      %v890 = vmax.f32 %v858, 0.0
      %v891 = vmax.f32 %v859, 0.0
      %v892 = vld [vmem:[%s5] sm:$0xff]
      %v893 = vld [vmem:[%s5 + $0x8] sm:$0xff]
      %v894 = vld [vmem:[%s5 + $0x10] sm:$0xff]
      %v895 = vld [vmem:[%s5 + $0x18] sm:$0xff]
      %v896 = vld [vmem:[%s5 + $0x20] sm:$0xff]
      %v897 = vld [vmem:[%s5 + $0x28] sm:$0xff]
      %v898 = vld [vmem:[%s5 + $0x30] sm:$0xff]
      %v899 = vld [vmem:[%s5 + $0x38] sm:$0xff]
      %v900 = vld [vmem:[%s5 + $0x40] sm:$0xff]
      %v901 = vld [vmem:[%s5 + $0x48] sm:$0xff]
      %v902 = vld [vmem:[%s5 + $0x50] sm:$0xff]
      %v903 = vld [vmem:[%s5 + $0x58] sm:$0xff]
      %v904 = vld [vmem:[%s5 + $0x60] sm:$0xff]
      %v905 = vld [vmem:[%s5 + $0x68] sm:$0xff]
      %v906 = vld [vmem:[%s5 + $0x70] sm:$0xff]
      %v907 = vld [vmem:[%s5 + $0x78] sm:$0xff]
      %v908 = vld [vmem:[%s5 + $0x80] sm:$0xff]
      %v909 = vld [vmem:[%s5 + $0x88] sm:$0xff]
      %v910 = vld [vmem:[%s5 + $0x90] sm:$0xff]
      %v911 = vld [vmem:[%s5 + $0x98] sm:$0xff]
      %v912 = vld [vmem:[%s5 + $0xa0] sm:$0xff]
      %v913 = vld [vmem:[%s5 + $0xa8] sm:$0xff]
      %v914 = vld [vmem:[%s5 + $0xb0] sm:$0xff]
      %v915 = vld [vmem:[%s5 + $0xb8] sm:$0xff]
      %v916 = vld [vmem:[%s5 + $0xc0] sm:$0xff]
      %v917 = vld [vmem:[%s5 + $0xc8] sm:$0xff]
      %v918 = vld [vmem:[%s5 + $0xd0] sm:$0xff]
      %v919 = vld [vmem:[%s5 + $0xd8] sm:$0xff]
      %v920 = vld [vmem:[%s5 + $0xe0] sm:$0xff]
      %v921 = vld [vmem:[%s5 + $0xe8] sm:$0xff]
      %v922 = vld [vmem:[%s5 + $0xf0] sm:$0xff]
      %v923 = vld [vmem:[%s5 + $0xf8] sm:$0xff]
      %v924 = vld [vmem:[%s5 + $0x100] sm:$0xff]
      %v925 = vld [vmem:[%s5 + $0x108] sm:$0xff]
      %v926 = vld [vmem:[%s5 + $0x110] sm:$0xff]
      %v927 = vld [vmem:[%s5 + $0x118] sm:$0xff]
      %v928 = vld [vmem:[%s5 + $0x120] sm:$0xff]
      %v929 = vld [vmem:[%s5 + $0x128] sm:$0xff]
      %v930 = vld [vmem:[%s5 + $0x130] sm:$0xff]
      %v931 = vld [vmem:[%s5 + $0x138] sm:$0xff]
      %v932 = vld [vmem:[%s5 + $0x140] sm:$0xff]
      %v933 = vld [vmem:[%s5 + $0x148] sm:$0xff]
      %v934 = vld [vmem:[%s5 + $0x150] sm:$0xff]
      %v935 = vld [vmem:[%s5 + $0x158] sm:$0xff]
      %v936 = vld [vmem:[%s5 + $0x160] sm:$0xff]
      %v937 = vld [vmem:[%s5 + $0x168] sm:$0xff]
      %v938 = vld [vmem:[%s5 + $0x170] sm:$0xff]
      %v939 = vld [vmem:[%s5 + $0x178] sm:$0xff]
      %v940 = vld [vmem:[%s5 + $0x180] sm:$0xff]
      %v941 = vld [vmem:[%s5 + $0x188] sm:$0xff]
      %v942 = vld [vmem:[%s5 + $0x190] sm:$0xff]
      %v943 = vld [vmem:[%s5 + $0x198] sm:$0xff]
      %v944 = vld [vmem:[%s5 + $0x1a0] sm:$0xff]
      %v945 = vld [vmem:[%s5 + $0x1a8] sm:$0xff]
      %v946 = vld [vmem:[%s5 + $0x1b0] sm:$0xff]
      %v947 = vld [vmem:[%s5 + $0x1b8] sm:$0xff]
      %v948 = vld [vmem:[%s5 + $0x1c0] sm:$0xff]
      %v949 = vld [vmem:[%s5 + $0x1c8] sm:$0xff]
      %v950 = vld [vmem:[%s5 + $0x1d0] sm:$0xff]
      %v951 = vld [vmem:[%s5 + $0x1d8] sm:$0xff]
      %v952 = vld [vmem:[%s5 + $0x1e0] sm:$0xff]
      %v953 = vld [vmem:[%s5 + $0x1e8] sm:$0xff]
      %v954 = vld [vmem:[%s5 + $0x1f0] sm:$0xff]
      %v955 = vld [vmem:[%s5 + $0x1f8] sm:$0xff]
      %v956 = vld [vmem:[%s6] sm:$0x3]
      %v958 = vlaneseq
      %v959 = vshrl.u32 %v958, 7
      %v960 = vsub.s32 0, %v959
      %v961 = vrot.slane %v956, %v960
      %v962 = vlaneseq
      %v963 = vshrl.u32 %v962, 7
      %v964 = vsub.s32 1, %v963
      %v965 = vrot.slane %v956, %v964
      %968 = vmatprep.subr.mxu0 %v893
      %969 = vmatpush1.msra.mxu0 %v892
      %970 = vmatprep.subr.mxu0 %v895
      %971 = vmatpush1.msra.mxu0 %v894
      %972 = vmatprep.subr.mxu0 %v897
      %973 = vmatpush1.msra.mxu0 %v896
      %974 = vmatprep.subr.mxu0 %v899
      %975 = vmatpush1.msra.mxu0 %v898
      %976 = vmatprep.subr.mxu0 %v901
      %977 = vmatpush1.msra.mxu0 %v900
      %978 = vmatprep.subr.mxu0 %v903
      %979 = vmatpush1.msra.mxu0 %v902
      %980 = vmatprep.subr.mxu0 %v905
      %981 = vmatpush1.msra.mxu0 %v904
      %982 = vmatprep.subr.mxu0 %v907
      %983 = vmatpush1.msra.mxu0 %v906
      %984 = vmatprep.subr.mxu0 %v909
      %985 = vmatpush1.msra.mxu0 %v908
      %986 = vmatprep.subr.mxu0 %v911
      %987 = vmatpush1.msra.mxu0 %v910
      %988 = vmatprep.subr.mxu0 %v913
      %989 = vmatpush1.msra.mxu0 %v912
      %990 = vmatprep.subr.mxu0 %v915
      %991 = vmatpush1.msra.mxu0 %v914
      %992 = vmatprep.subr.mxu0 %v917
      %993 = vmatpush1.msra.mxu0 %v916
      %994 = vmatprep.subr.mxu0 %v919
      %995 = vmatpush1.msra.mxu0 %v918
      %996 = vmatprep.subr.mxu0 %v921
      %997 = vmatpush1.msra.mxu0 %v920
      %998 = vmatprep.subr.mxu0 %v923
      %999 = vmatpush1.msra.mxu0 %v922
      %1000 = vmatprep.subr.mxu0 %v925
      %1001 = vmatpush1.msra.mxu0 %v924
      %1002 = vmatprep.subr.mxu0 %v927
      %1003 = vmatpush1.msra.mxu0 %v926
      %1004 = vmatprep.subr.mxu0 %v929
      %1005 = vmatpush1.msra.mxu0 %v928
      %1006 = vmatprep.subr.mxu0 %v931
      %1007 = vmatpush1.msra.mxu0 %v930
      %1008 = vmatprep.subr.mxu0 %v933
      %1009 = vmatpush1.msra.mxu0 %v932
      %1010 = vmatprep.subr.mxu0 %v935
      %1011 = vmatpush1.msra.mxu0 %v934
      %1012 = vmatprep.subr.mxu0 %v937
      %1013 = vmatpush1.msra.mxu0 %v936
      %1014 = vmatprep.subr.mxu0 %v939
      %1015 = vmatpush1.msra.mxu0 %v938
      %1016 = vmatprep.subr.mxu0 %v941
      %1017 = vmatpush1.msra.mxu0 %v940
      %1018 = vmatprep.subr.mxu0 %v943
      %1019 = vmatpush1.msra.mxu0 %v942
      %1020 = vmatprep.subr.mxu0 %v945
      %1021 = vmatpush1.msra.mxu0 %v944
      %1022 = vmatprep.subr.mxu0 %v947
      %1023 = vmatpush1.msra.mxu0 %v946
      %1024 = vmatprep.subr.mxu0 %v949
      %1025 = vmatpush1.msra.mxu0 %v948
      %1026 = vmatprep.subr.mxu0 %v951
      %1027 = vmatpush1.msra.mxu0 %v950
      %1028 = vmatprep.subr.mxu0 %v953
      %1029 = vmatpush1.msra.mxu0 %v952
      %1030 = vmatprep.subr.mxu0 %v955
      %1031 = vmatpush1.msra.mxu0 %v954
      %1032 = vmatprep.mubr.f32.mxu0 %v861
      %1033 = vmatmul.mubr.f32.gmra.mrb[0].mxu0 %v860
      %v1034 = vpop.f32.mrb[0].mxu0
      %v1035 = vadd.f32 %v961, %v1034
      %v1036 = vpop.f32.mrb[0].mxu0
      %v1037 = vadd.f32 %v965, %v1036
      %1038 = vmatprep.mubr.f32.mxu0 %v863
      %1039 = vmatmul.mubr.f32.gmra.mrb[0].mxu0 %v862
      %v1040 = vpop.f32.mrb[0].mxu0
      %v1041 = vadd.f32 %v961, %v1040
      %v1042 = vpop.f32.mrb[0].mxu0
      %v1043 = vadd.f32 %v965, %v1042
      %1044 = vmatprep.mubr.f32.mxu0 %v865
      %1045 = vmatmul.mubr.f32.gmra.mrb[0].mxu0 %v864
      %v1046 = vpop.f32.mrb[0].mxu0
      %v1047 = vadd.f32 %v961, %v1046
      %v1048 = vpop.f32.mrb[0].mxu0
      %v1049 = vadd.f32 %v965, %v1048
      %1050 = vmatprep.mubr.f32.mxu0 %v867
      %1051 = vmatmul.mubr.f32.gmra.mrb[0].mxu0 %v866
      %v1052 = vpop.f32.mrb[0].mxu0
      %v1053 = vadd.f32 %v961, %v1052
      %v1054 = vpop.f32.mrb[0].mxu0
      %v1055 = vadd.f32 %v965, %v1054
      %1056 = vmatprep.mubr.f32.mxu0 %v869
      %1057 = vmatmul.mubr.f32.gmra.mrb[0].mxu0 %v868
      %v1058 = vpop.f32.mrb[0].mxu0
      %v1059 = vadd.f32 %v961, %v1058
      %v1060 = vpop.f32.mrb[0].mxu0
      %v1061 = vadd.f32 %v965, %v1060
      %1062 = vmatprep.mubr.f32.mxu0 %v871
      %1063 = vmatmul.mubr.f32.gmra.mrb[0].mxu0 %v870
      %v1064 = vpop.f32.mrb[0].mxu0
      %v1065 = vadd.f32 %v961, %v1064
      %v1066 = vpop.f32.mrb[0].mxu0
      %v1067 = vadd.f32 %v965, %v1066
      %1068 = vmatprep.mubr.f32.mxu0 %v873
      %1069 = vmatmul.mubr.f32.gmra.mrb[0].mxu0 %v872
      %v1070 = vpop.f32.mrb[0].mxu0
      %v1071 = vadd.f32 %v961, %v1070
      %v1072 = vpop.f32.mrb[0].mxu0
      %v1073 = vadd.f32 %v965, %v1072
      %1074 = vmatprep.mubr.f32.mxu0 %v875
      %1075 = vmatmul.mubr.f32.gmra.mrb[0].mxu0 %v874
      %v1076 = vpop.f32.mrb[0].mxu0
      %v1077 = vadd.f32 %v961, %v1076
      %v1078 = vpop.f32.mrb[0].mxu0
      %v1079 = vadd.f32 %v965, %v1078
      %1080 = vmatprep.mubr.f32.mxu0 %v877
      %1081 = vmatmul.mubr.f32.gmra.mrb[0].mxu0 %v876
      %v1082 = vpop.f32.mrb[0].mxu0
      %v1083 = vadd.f32 %v961, %v1082
      %v1084 = vpop.f32.mrb[0].mxu0
      %v1085 = vadd.f32 %v965, %v1084
      %1086 = vmatprep.mubr.f32.mxu0 %v879
      %1087 = vmatmul.mubr.f32.gmra.mrb[0].mxu0 %v878
      %v1088 = vpop.f32.mrb[0].mxu0
      %v1089 = vadd.f32 %v961, %v1088
      %v1090 = vpop.f32.mrb[0].mxu0
      %v1091 = vadd.f32 %v965, %v1090
      %1092 = vmatprep.mubr.f32.mxu0 %v881
      %1093 = vmatmul.mubr.f32.gmra.mrb[0].mxu0 %v880
      %v1094 = vpop.f32.mrb[0].mxu0
      %v1095 = vadd.f32 %v961, %v1094
      %v1096 = vpop.f32.mrb[0].mxu0
      %v1097 = vadd.f32 %v965, %v1096
      %1098 = vmatprep.mubr.f32.mxu0 %v883
      %1099 = vmatmul.mubr.f32.gmra.mrb[0].mxu0 %v882
      %v1100 = vpop.f32.mrb[0].mxu0
      %v1101 = vadd.f32 %v961, %v1100
      %v1102 = vpop.f32.mrb[0].mxu0
      %v1103 = vadd.f32 %v965, %v1102
      %1104 = vmatprep.mubr.f32.mxu0 %v885
      %1105 = vmatmul.mubr.f32.gmra.mrb[0].mxu0 %v884
      %v1106 = vpop.f32.mrb[0].mxu0
      %v1107 = vadd.f32 %v961, %v1106
      %v1108 = vpop.f32.mrb[0].mxu0
      %v1109 = vadd.f32 %v965, %v1108
      %1110 = vmatprep.mubr.f32.mxu0 %v887
      %1111 = vmatmul.mubr.f32.gmra.mrb[0].mxu0 %v886
      %v1112 = vpop.f32.mrb[0].mxu0
      %v1113 = vadd.f32 %v961, %v1112
      %v1114 = vpop.f32.mrb[0].mxu0
      %v1115 = vadd.f32 %v965, %v1114
      %1116 = vmatprep.mubr.f32.mxu0 %v889
      %1117 = vmatmul.mubr.f32.gmra.mrb[0].mxu0 %v888
      %v1118 = vpop.f32.mrb[0].mxu0
      %v1119 = vadd.f32 %v961, %v1118
      %v1120 = vpop.f32.mrb[0].mxu0
      %v1121 = vadd.f32 %v965, %v1120
      %1122 = vmatprep.mubr.f32.mxu0 %v891
      %1123 = vmatmul.mubr.f32.gmra.mrb[0].mxu0 %v890
      %v1124 = vpop.f32.mrb[0].mxu0
      %v1125 = vadd.f32 %v961, %v1124
      %v1126 = vpop.f32.mrb[0].mxu0
      %v1127 = vadd.f32 %v965, %v1126
      %1128 = vdwg.mxu0
      %v1129 = vmax.f32 %v1035, 0.0
      %v1130 = vmax.f32 %v1037, 0.0
      %v1131 = vmax.f32 %v1041, 0.0
      %v1132 = vmax.f32 %v1043, 0.0
      %v1133 = vmax.f32 %v1047, 0.0
      %v1134 = vmax.f32 %v1049, 0.0
      %v1135 = vmax.f32 %v1053, 0.0
      %v1136 = vmax.f32 %v1055, 0.0
      %v1137 = vmax.f32 %v1059, 0.0
      %v1138 = vmax.f32 %v1061, 0.0
      %v1139 = vmax.f32 %v1065, 0.0
      %v1140 = vmax.f32 %v1067, 0.0
      %v1141 = vmax.f32 %v1071, 0.0
      %v1142 = vmax.f32 %v1073, 0.0
      %v1143 = vmax.f32 %v1077, 0.0
      %v1144 = vmax.f32 %v1079, 0.0
      %v1145 = vmax.f32 %v1083, 0.0
      %v1146 = vmax.f32 %v1085, 0.0
      %v1147 = vmax.f32 %v1089, 0.0
      %v1148 = vmax.f32 %v1091, 0.0
      %v1149 = vmax.f32 %v1095, 0.0
      %v1150 = vmax.f32 %v1097, 0.0
      %v1151 = vmax.f32 %v1101, 0.0
      %v1152 = vmax.f32 %v1103, 0.0
      %v1153 = vmax.f32 %v1107, 0.0
      %v1154 = vmax.f32 %v1109, 0.0
      %v1155 = vmax.f32 %v1113, 0.0
      %v1156 = vmax.f32 %v1115, 0.0
      %v1157 = vmax.f32 %v1119, 0.0
      %v1158 = vmax.f32 %v1121, 0.0
      %v1159 = vmax.f32 %v1125, 0.0
      %v1160 = vmax.f32 %v1127, 0.0
      %v1161 = vld [vmem:[%s7] sm:$0xff]
      %v1162 = vld [vmem:[%s7 + $0x8] sm:$0xff]
      %v1163 = vld [vmem:[%s7 + $0x10] sm:$0xff]
      %v1164 = vld [vmem:[%s7 + $0x18] sm:$0xff]
      %v1165 = vld [vmem:[%s7 + $0x20] sm:$0xff]
      %v1166 = vld [vmem:[%s7 + $0x28] sm:$0xff]
      %v1167 = vld [vmem:[%s7 + $0x30] sm:$0xff]
      %v1168 = vld [vmem:[%s7 + $0x38] sm:$0xff]
      %v1169 = vld [vmem:[%s7 + $0x40] sm:$0xff]
      %v1170 = vld [vmem:[%s7 + $0x48] sm:$0xff]
      %v1171 = vld [vmem:[%s7 + $0x50] sm:$0xff]
      %v1172 = vld [vmem:[%s7 + $0x58] sm:$0xff]
      %v1173 = vld [vmem:[%s7 + $0x60] sm:$0xff]
      %v1174 = vld [vmem:[%s7 + $0x68] sm:$0xff]
      %v1175 = vld [vmem:[%s7 + $0x70] sm:$0xff]
      %v1176 = vld [vmem:[%s7 + $0x78] sm:$0xff]
      %v1177 = vld [vmem:[%s7 + $0x80] sm:$0xff]
      %v1178 = vld [vmem:[%s7 + $0x88] sm:$0xff]
      %v1179 = vld [vmem:[%s7 + $0x90] sm:$0xff]
      %v1180 = vld [vmem:[%s7 + $0x98] sm:$0xff]
      %v1181 = vld [vmem:[%s7 + $0xa0] sm:$0xff]
      %v1182 = vld [vmem:[%s7 + $0xa8] sm:$0xff]
      %v1183 = vld [vmem:[%s7 + $0xb0] sm:$0xff]
      %v1184 = vld [vmem:[%s7 + $0xb8] sm:$0xff]
      %v1185 = vld [vmem:[%s7 + $0xc0] sm:$0xff]
      %v1186 = vld [vmem:[%s7 + $0xc8] sm:$0xff]
      %v1187 = vld [vmem:[%s7 + $0xd0] sm:$0xff]
      %v1188 = vld [vmem:[%s7 + $0xd8] sm:$0xff]
      %v1189 = vld [vmem:[%s7 + $0xe0] sm:$0xff]
      %v1190 = vld [vmem:[%s7 + $0xe8] sm:$0xff]
      %v1191 = vld [vmem:[%s7 + $0xf0] sm:$0xff]
      %v1192 = vld [vmem:[%s7 + $0xf8] sm:$0xff]
      %v1193 = vld [vmem:[%s8] sm:$0x1]
      %v1195 = vlaneseq
      %v1196 = vshrl.u32 %v1195, 7
      %v1197 = vsub.s32 0, %v1196
      %v1198 = vrot.slane %v1193, %v1197
      %1200 = vmatprep.subr.mxu0 0.0
      %1201 = vmatpush1.msra.mxu0 %v1161
      %1202 = vmatprep.subr.mxu0 0.0
      %1203 = vmatpush1.msra.mxu0 %v1162
      %1204 = vmatprep.subr.mxu0 0.0
      %1205 = vmatpush1.msra.mxu0 %v1163
      %1206 = vmatprep.subr.mxu0 0.0
      %1207 = vmatpush1.msra.mxu0 %v1164
      %1208 = vmatprep.subr.mxu0 0.0
      %1209 = vmatpush1.msra.mxu0 %v1165
      %1210 = vmatprep.subr.mxu0 0.0
      %1211 = vmatpush1.msra.mxu0 %v1166
      %1212 = vmatprep.subr.mxu0 0.0
      %1213 = vmatpush1.msra.mxu0 %v1167
      %1214 = vmatprep.subr.mxu0 0.0
      %1215 = vmatpush1.msra.mxu0 %v1168
      %1216 = vmatprep.subr.mxu0 0.0
      %1217 = vmatpush1.msra.mxu0 %v1169
      %1218 = vmatprep.subr.mxu0 0.0
      %1219 = vmatpush1.msra.mxu0 %v1170
      %1220 = vmatprep.subr.mxu0 0.0
      %1221 = vmatpush1.msra.mxu0 %v1171
      %1222 = vmatprep.subr.mxu0 0.0
      %1223 = vmatpush1.msra.mxu0 %v1172
      %1224 = vmatprep.subr.mxu0 0.0
      %1225 = vmatpush1.msra.mxu0 %v1173
      %1226 = vmatprep.subr.mxu0 0.0
      %1227 = vmatpush1.msra.mxu0 %v1174
      %1228 = vmatprep.subr.mxu0 0.0
      %1229 = vmatpush1.msra.mxu0 %v1175
      %1230 = vmatprep.subr.mxu0 0.0
      %1231 = vmatpush1.msra.mxu0 %v1176
      %1232 = vmatprep.subr.mxu0 0.0
      %1233 = vmatpush1.msra.mxu0 %v1177
      %1234 = vmatprep.subr.mxu0 0.0
      %1235 = vmatpush1.msra.mxu0 %v1178
      %1236 = vmatprep.subr.mxu0 0.0
      %1237 = vmatpush1.msra.mxu0 %v1179
      %1238 = vmatprep.subr.mxu0 0.0
      %1239 = vmatpush1.msra.mxu0 %v1180
      %1240 = vmatprep.subr.mxu0 0.0
      %1241 = vmatpush1.msra.mxu0 %v1181
      %1242 = vmatprep.subr.mxu0 0.0
      %1243 = vmatpush1.msra.mxu0 %v1182
      %1244 = vmatprep.subr.mxu0 0.0
      %1245 = vmatpush1.msra.mxu0 %v1183
      %1246 = vmatprep.subr.mxu0 0.0
      %1247 = vmatpush1.msra.mxu0 %v1184
      %1248 = vmatprep.subr.mxu0 0.0
      %1249 = vmatpush1.msra.mxu0 %v1185
      %1250 = vmatprep.subr.mxu0 0.0
      %1251 = vmatpush1.msra.mxu0 %v1186
      %1252 = vmatprep.subr.mxu0 0.0
      %1253 = vmatpush1.msra.mxu0 %v1187
      %1254 = vmatprep.subr.mxu0 0.0
      %1255 = vmatpush1.msra.mxu0 %v1188
      %1256 = vmatprep.subr.mxu0 0.0
      %1257 = vmatpush1.msra.mxu0 %v1189
      %1258 = vmatprep.subr.mxu0 0.0
      %1259 = vmatpush1.msra.mxu0 %v1190
      %1260 = vmatprep.subr.mxu0 0.0
      %1261 = vmatpush1.msra.mxu0 %v1191
      %1262 = vmatprep.subr.mxu0 0.0
      %1263 = vmatpush1.msra.mxu0 %v1192
      %1264 = vmatprep.mubr.f32.mxu0 %v1130
      %1265 = vmatmul.mubr.f32.gmra.mrb[0].mxu0 %v1129
      %v1266 = vpop.f32.mrb[0].mxu0
      %v1267 = vadd.f32 %v1198, %v1266
      %v1268 = vpop.f32.mrb[0].mxu0
      %1269 = vmatprep.mubr.f32.mxu0 %v1132
      %1270 = vmatmul.mubr.f32.gmra.mrb[0].mxu0 %v1131
      %v1271 = vpop.f32.mrb[0].mxu0
      %v1272 = vadd.f32 %v1198, %v1271
      %v1273 = vpop.f32.mrb[0].mxu0
      %1274 = vmatprep.mubr.f32.mxu0 %v1134
      %1275 = vmatmul.mubr.f32.gmra.mrb[0].mxu0 %v1133
      %v1276 = vpop.f32.mrb[0].mxu0
      %v1277 = vadd.f32 %v1198, %v1276
      %v1278 = vpop.f32.mrb[0].mxu0
      %1279 = vmatprep.mubr.f32.mxu0 %v1136
      %1280 = vmatmul.mubr.f32.gmra.mrb[0].mxu0 %v1135
      %v1281 = vpop.f32.mrb[0].mxu0
      %v1282 = vadd.f32 %v1198, %v1281
      %v1283 = vpop.f32.mrb[0].mxu0
      %1284 = vmatprep.mubr.f32.mxu0 %v1138
      %1285 = vmatmul.mubr.f32.gmra.mrb[0].mxu0 %v1137
      %v1286 = vpop.f32.mrb[0].mxu0
      %v1287 = vadd.f32 %v1198, %v1286
      %v1288 = vpop.f32.mrb[0].mxu0
      %1289 = vmatprep.mubr.f32.mxu0 %v1140
      %1290 = vmatmul.mubr.f32.gmra.mrb[0].mxu0 %v1139
      %v1291 = vpop.f32.mrb[0].mxu0
      %v1292 = vadd.f32 %v1198, %v1291
      %v1293 = vpop.f32.mrb[0].mxu0
      %1294 = vmatprep.mubr.f32.mxu0 %v1142
      %1295 = vmatmul.mubr.f32.gmra.mrb[0].mxu0 %v1141
      %v1296 = vpop.f32.mrb[0].mxu0
      %v1297 = vadd.f32 %v1198, %v1296
      %v1298 = vpop.f32.mrb[0].mxu0
      %1299 = vmatprep.mubr.f32.mxu0 %v1144
      %1300 = vmatmul.mubr.f32.gmra.mrb[0].mxu0 %v1143
      %v1301 = vpop.f32.mrb[0].mxu0
      %v1302 = vadd.f32 %v1198, %v1301
      %v1303 = vpop.f32.mrb[0].mxu0
      %1304 = vmatprep.mubr.f32.mxu0 %v1146
      %1305 = vmatmul.mubr.f32.gmra.mrb[0].mxu0 %v1145
      %v1306 = vpop.f32.mrb[0].mxu0
      %v1307 = vadd.f32 %v1198, %v1306
      %v1308 = vpop.f32.mrb[0].mxu0
      %1309 = vmatprep.mubr.f32.mxu0 %v1148
      %1310 = vmatmul.mubr.f32.gmra.mrb[0].mxu0 %v1147
      %v1311 = vpop.f32.mrb[0].mxu0
      %v1312 = vadd.f32 %v1198, %v1311
      %v1313 = vpop.f32.mrb[0].mxu0
      %1314 = vmatprep.mubr.f32.mxu0 %v1150
      %1315 = vmatmul.mubr.f32.gmra.mrb[0].mxu0 %v1149
      %v1316 = vpop.f32.mrb[0].mxu0
      %v1317 = vadd.f32 %v1198, %v1316
      %v1318 = vpop.f32.mrb[0].mxu0
      %1319 = vmatprep.mubr.f32.mxu0 %v1152
      %1320 = vmatmul.mubr.f32.gmra.mrb[0].mxu0 %v1151
      %v1321 = vpop.f32.mrb[0].mxu0
      %v1322 = vadd.f32 %v1198, %v1321
      %v1323 = vpop.f32.mrb[0].mxu0
      %1324 = vmatprep.mubr.f32.mxu0 %v1154
      %1325 = vmatmul.mubr.f32.gmra.mrb[0].mxu0 %v1153
      %v1326 = vpop.f32.mrb[0].mxu0
      %v1327 = vadd.f32 %v1198, %v1326
      %v1328 = vpop.f32.mrb[0].mxu0
      %1329 = vmatprep.mubr.f32.mxu0 %v1156
      %1330 = vmatmul.mubr.f32.gmra.mrb[0].mxu0 %v1155
      %v1331 = vpop.f32.mrb[0].mxu0
      %v1332 = vadd.f32 %v1198, %v1331
      %v1333 = vpop.f32.mrb[0].mxu0
      %1334 = vmatprep.mubr.f32.mxu0 %v1158
      %1335 = vmatmul.mubr.f32.gmra.mrb[0].mxu0 %v1157
      %v1336 = vpop.f32.mrb[0].mxu0
      %v1337 = vadd.f32 %v1198, %v1336
      %v1338 = vpop.f32.mrb[0].mxu0
      %1339 = vmatprep.mubr.f32.mxu0 %v1160
      %1340 = vmatmul.mubr.f32.gmra.mrb[0].mxu0 %v1159
      %v1341 = vpop.f32.mrb[0].mxu0
      %v1342 = vadd.f32 %v1198, %v1341
      %v1343 = vpop.f32.mrb[0].mxu0
      %1344 = vdwg.mxu0
      %vm1345 = vcmask 15360
      %1346 = vst.msk [vmem:[%s356] sm:$0xff] %vm1345, %v1267
      %1347 = vst.msk [vmem:[%s356 + $0x8] sm:$0xff] %vm1345, %v1272
      %1348 = vst.msk [vmem:[%s356 + $0x10] sm:$0xff] %vm1345, %v1277
      %1349 = vst.msk [vmem:[%s356 + $0x18] sm:$0xff] %vm1345, %v1282
      %1350 = vst.msk [vmem:[%s356 + $0x20] sm:$0xff] %vm1345, %v1287
      %1351 = vst.msk [vmem:[%s356 + $0x28] sm:$0xff] %vm1345, %v1292
      %1352 = vst.msk [vmem:[%s356 + $0x30] sm:$0xff] %vm1345, %v1297
      %1353 = vst.msk [vmem:[%s356 + $0x38] sm:$0xff] %vm1345, %v1302
      %1354 = vst.msk [vmem:[%s356 + $0x40] sm:$0xff] %vm1345, %v1307
      %1355 = vst.msk [vmem:[%s356 + $0x48] sm:$0xff] %vm1345, %v1312
      %1356 = vst.msk [vmem:[%s356 + $0x50] sm:$0xff] %vm1345, %v1317
      %1357 = vst.msk [vmem:[%s356 + $0x58] sm:$0xff] %vm1345, %v1322
      %1358 = vst.msk [vmem:[%s356 + $0x60] sm:$0xff] %vm1345, %v1327
      %1359 = vst.msk [vmem:[%s356 + $0x68] sm:$0xff] %vm1345, %v1332
      %1360 = vst.msk [vmem:[%s356 + $0x70] sm:$0xff] %vm1345, %v1337
      %1361 = vst.msk [vmem:[%s356 + $0x78] sm:$0xff] %vm1345, %v1342
      %s1362 = smul.u32 16, %s20
      %p1363 = scmp.lt.s32.totalorder %s1362, 31
      %s1364 = scalar_select %p1363, %s1362, 31
      %s1365 = smul.addr %s1364, 8
      %s1366 = scalar_lea.vmem %s9, %s1365
      // Predicated region
      $region57: #{tpu_custom_call.1} parent=55 // pred_check
        %p1367 = pneg %p237
      $region58: #{tpu_custom_call.1} parent=55 // pred_check_branch
        %1369 = sbr.rel (%p1367) target = $region60
      $region59: #{tpu_custom_call.1} parent=55 // pred_region
        %s1370 = smul.u32 16, %s20
      $region60: #{tpu_custom_call.1} parent=55 // pred_fallthru
        _
    $region56: #{tpu_custom_call.1} parent=5 // pred_fallthru
      _
    %p1371 = scmp.le.s32.totalorder 2, %s15
    // Predicated region
    $region61: #{tpu_custom_call.1} parent=5 // pred_check
      %p1372 = pneg %p1371
    $region62: #{tpu_custom_call.1} parent=5 // pred_check_branch
      %1374 = sbr.rel (%p1372) target = $region64
    $region63: #{tpu_custom_call.1} parent=5 // pred_region
      %s1375 = ssub.s32 %s15, 2
      // Predicated region
      $region65: #{tpu_custom_call.1} parent=63 // pred_check
        %p1376 = pneg %p243
      $region66: #{tpu_custom_call.1} parent=63 // pred_check_branch
        %1378 = sbr.rel (%p1376) target = $region68
      $region67: #{tpu_custom_call.1} parent=63 // pred_region
        %s1379 = smul.u32 16, %s21
        %p1380 = scmp.lt.s32.totalorder %s1379, 31
        %s1381 = scalar_select %p1380, %s1379, 31
        %s1382 = smul.addr %s1381, 8
        %s1383 = scalar_lea.vmem %s9, %s1382
      $region68: #{tpu_custom_call.1} parent=63 // pred_fallthru
        _
    $region64: #{tpu_custom_call.1} parent=5 // pred_fallthru
      _
  $region6: #{tpu_custom_call.1} parent=0 // loop_footer
    %s19 = sadd.s32 1, %s15
  $region7: #{tpu_custom_call.1} parent=0 // loop_footer_branch
    %14 = sbr.rel target = $region3
  $region8: #{tpu_custom_call.1} parent=0 // loop_exit
    _

</llo_original>
